<compile_context>
chip_gen: v6e
topology: v6e:2x2x1
jax: 0.10.0
libtpu: 0.0.40
codegen_flags: <defaults>
</compile_context>

<pallas_src>
import functools
from typing import NamedTuple, Tuple

import jax
import jax.numpy as jnp
import numpy as np
from jax.experimental import pallas as pl
from jax.experimental.pallas import tpu as pltpu


_SUBLANE = 8  # sublane tile height: pad every channel-like dim to this


def _round_up(v, m):
    return ((v + m - 1) // m) * m


class LevelCfg(NamedTuple):
    k: int
    d: int
    c_in: int        # padded
    c_out: int       # padded
    has_down: bool


class BranchCfg(NamedTuple):
    levels: Tuple[LevelCfg, ...]
    B: int
    L: int           # valid frames per batch segment
    P: int           # per-segment causal left pad = (k-1) * 2^(n_levels-1)
    W: int           # P + L
    tail_start: int  # first output frame consumed by the head
    T: int           # frames emitted per batch element


# ----------------------------------------------------------------------------
# In-kernel helpers
# ----------------------------------------------------------------------------
def _dilated_causal_conv(h_bf16, w_merged, bias, *, k, d, width):
    """h_bf16: (C_in, width) bf16 with zeroed pad columns.
    w_merged: (C_out, k*C_in) bf16, tap-major along the contraction axis.
    Returns (C_out, width) f32 (pad columns hold garbage; caller masks)."""
    c_in = h_bf16.shape[0]
    p = (k - 1) * d
    # Causal left pad by concatenating a bf16 zero splat (no f32 intermediate).
    hp = jnp.concatenate(
        [jnp.zeros((c_in, p), jnp.bfloat16), h_bf16], axis=-1)
    # im2col: stack the k shifted windows along the contraction (sublane) axis
    # so the whole conv is ONE deeper MXU matmul instead of k shallow ones.
    # c_in is a multiple of 8 (host-side padding), so each window is a clean
    # sublane-aligned tile stack.
    rhs = jnp.concatenate(
        [hp[:, j * d: j * d + width] for j in range(k)], axis=0)
    return jnp.dot(w_merged, rhs, preferred_element_type=jnp.float32) + bias


def _run_branch(x_ref, level_refs, wlin_ref, out_ref, cfg: BranchCfg):
    width = cfg.B * cfg.W

    # Per-segment validity mask (pad columns -> 0), built from an iota so no
    # dense non-splat constants are needed inside the kernel.
    col = jax.lax.broadcasted_iota(jnp.int32, (1, width), 1)
    valid = None
    for b in range(cfg.B):
        seg = (col >= b * cfg.W + cfg.P) & (col < (b + 1) * cfg.W)
        valid = seg if valid is None else (valid | seg)
    maskf = jnp.where(valid, 1.0, 0.0)            # (1, width) f32

    h = x_ref[...]                                # (C_pad, width) f32, pads=0
    i = 0
    for lvl in cfg.levels:
        w1m, b1 = level_refs[i][...], level_refs[i + 1][...]
        w2m, b2 = level_refs[i + 2][...], level_refs[i + 3][...]
        i += 4
        h_bf = h.astype(jnp.bfloat16)             # cast once, reuse below
        h1 = jnp.maximum(
            _dilated_causal_conv(h_bf, w1m, b1, k=lvl.k, d=lvl.d, width=width),
            0.0) * maskf
        h2 = jnp.maximum(
            _dilated_causal_conv(h1.astype(jnp.bfloat16), w2m, b2,
                                 k=lvl.k, d=lvl.d, width=width),
            0.0)
        if lvl.has_down:                          # 1x1 residual (C_in != C_out)
            wd, bd = level_refs[i][...], level_refs[i + 1][...]
            i += 2
            res = jnp.dot(wd, h_bf, preferred_element_type=jnp.float32) + bd
        else:                                     # identity residual: no matmul
            res = h
        h = jnp.maximum(h2 + res, 0.0) * maskf

    # Tail frames consumed by the head: local frames [tail_start, L) of each
    # batch segment, concatenated batch-major along lanes -> (C_last, B*T).
    base = cfg.P + cfg.tail_start
    cols = [h[:, b * cfg.W + base: b * cfg.W + base + cfg.T]
            for b in range(cfg.B)]
    y1 = cols[0] if cfg.B == 1 else jnp.concatenate(cols, axis=-1)

    # Fused head partial: lin_w_branch @ y1 -> (O_pad, B*T).  No transposes.
    out_ref[0] = jnp.dot(wlin_ref[...], y1.astype(jnp.bfloat16),
                         preferred_element_type=jnp.float32)


def _make_bilat_kernel(cfg_c, cfg_nc, n_flat_c, n_flat_nc):
    def kernel(*refs):
        x_c_ref, x_nc_ref = refs[0], refs[1]
        pos = 2
        c_refs = refs[pos:pos + n_flat_c]
        pos += n_flat_c
        nc_refs = refs[pos:pos + n_flat_nc]
        pos += n_flat_nc
        wlin_c_ref, wlin_nc_ref = refs[pos], refs[pos + 1]
        out_ref = refs[pos + 2]

        br = pl.program_id(0)

        @pl.when(br == 0)
        def _():
            _run_branch(x_c_ref, c_refs, wlin_c_ref, out_ref, cfg_c)

        @pl.when(br == 1)
        def _():
            _run_branch(x_nc_ref, nc_refs, wlin_nc_ref, out_ref, cfg_nc)

    return kernel


# ----------------------------------------------------------------------------
# Host-side preparation
# ----------------------------------------------------------------------------
def _merge_taps(w):
    """(k, C_out, C_in) -> (C_out, k*C_in), tap-major along the contraction."""
    k, c_out, c_in = w.shape
    return jnp.transpose(w, (1, 0, 2)).reshape(c_out, k * c_in)


def _prepare_branch(xb, layers, k, tail_start):
    """Fold batch into lanes, pad channels to the sublane tile, and
    flatten/merge the branch's weights."""
    B, c_in, L = xb.shape
    n = len(layers)
    P = (k - 1) * (2 ** (n - 1))
    W = P + L
    T = L - tail_start
    assert T >= 1, "input too short for the effective history"

    c_in_pad = _round_up(c_in, _SUBLANE)

    # One-time input prep: zero-pad channels to a sublane multiple, per-segment
    # causal left zero-pad, batch folded into the lane axis -> (C_pad, B*W).
    xp = jnp.pad(xb.astype(jnp.float32),
                 ((0, 0), (0, c_in_pad - c_in), (P, 0)))
    x_folded = jnp.transpose(xp, (1, 0, 2)).reshape(c_in_pad, B * W)

    levels, flat = [], []
    c_prev, c_prev_pad = c_in, c_in_pad
    for i, p in enumerate(layers):
        d = 2 ** i
        c_out = p["w2"].shape[1]
        c_out_pad = _round_up(c_out, _SUBLANE)
        has_down = "wd" in p          # decided by the ORIGINAL channel counts
        levels.append(LevelCfg(k=k, d=d, c_in=c_prev_pad, c_out=c_out_pad,
                               has_down=has_down))

        # Zero-pad every weight / bias to sublane-aligned channel counts; the
        # extra rows/cols are exact zeros so the math is unchanged.
        w1p = jnp.pad(p["w1"], ((0, 0), (0, c_out_pad - c_out),
                                (0, c_prev_pad - c_prev)))
        w2p = jnp.pad(p["w2"], ((0, 0), (0, c_out_pad - c_out),
                                (0, c_out_pad - c_out)))
        b1p = jnp.pad(p["b1"], ((0, c_out_pad - c_out), (0, 0)))
        b2p = jnp.pad(p["b2"], ((0, c_out_pad - c_out), (0, 0)))
        flat += [_merge_taps(w1p).astype(jnp.bfloat16), b1p.astype(jnp.float32),
                 _merge_taps(w2p).astype(jnp.bfloat16), b2p.astype(jnp.float32)]
        if has_down:
            wdp = jnp.pad(p["wd"], ((0, c_out_pad - c_out),
                                    (0, c_prev_pad - c_prev)))
            bdp = jnp.pad(p["bd"], ((0, c_out_pad - c_out), (0, 0)))
            flat += [wdp.astype(jnp.bfloat16), bdp.astype(jnp.float32)]
        c_prev, c_prev_pad = c_out, c_out_pad

    cfg = BranchCfg(levels=tuple(levels), B=B, L=L, P=P, W=W,
                    tail_start=tail_start, T=T)
    return cfg, x_folded, flat


def bilat_tcn_forward(x, params, *, eff_hist_c, eff_hist_nc,
                      ksize_c, ksize_nc):
    B, _, Lx = x.shape
    assert Lx > max(eff_hist_c, eff_hist_nc), "input too short for eff_hist"
    # NOTE: this mirrors the PyTorch module exactly: x_c is sliced with
    # eff_hist_nc and its output tail with eff_hist_c (and vice versa).
    # The module's empty-sequence_lens concat requires eff_hist_c == eff_hist_nc.
    assert eff_hist_c == eff_hist_nc, (
        "BilatTCN's empty-sequence_lens path requires eff_hist_c == eff_hist_nc")

    x_c = x[:, :, :eff_hist_nc + 1]
    x_nc = jnp.flip(x[:, :, -(eff_hist_c + 1):], axis=2)

    cfg_c, xf_c, flat_c = _prepare_branch(x_c, params["tcn_c"], ksize_c,
                                          eff_hist_c)
    cfg_nc, xf_nc, flat_nc = _prepare_branch(x_nc, params["tcn_nc"], ksize_nc,
                                             eff_hist_nc)
    assert cfg_c.T == cfg_nc.T and cfg_c.B == cfg_nc.B

    lin_w = params["lin_w"]                       # (O, C_c_last + C_nc_last)
    O = lin_w.shape[0]
    O_pad = _round_up(O, _SUBLANE)
    c_c_last = params["tcn_c"][-1]["w2"].shape[1]
    c_c_last_pad = cfg_c.levels[-1].c_out
    c_nc_last = params["tcn_nc"][-1]["w2"].shape[1]
    c_nc_last_pad = cfg_nc.levels[-1].c_out
    wlin_c = jnp.pad(lin_w[:, :c_c_last],
                     ((0, O_pad - O), (0, c_c_last_pad - c_c_last))
                     ).astype(jnp.bfloat16)
    wlin_nc = jnp.pad(lin_w[:, c_c_last:],
                      ((0, O_pad - O), (0, c_nc_last_pad - c_nc_last))
                      ).astype(jnp.bfloat16)

    inputs = [xf_c, xf_nc] + flat_c + flat_nc + [wlin_c, wlin_nc]
    in_specs = [pl.BlockSpec(a.shape, lambda br, _n=a.ndim: (0,) * _n)
                for a in inputs]

    NT = cfg_c.B * cfg_c.T
    kernel = _make_bilat_kernel(cfg_c, cfg_nc, len(flat_c), len(flat_nc))

    parts = pl.pallas_call(
        kernel,
        out_shape=jax.ShapeDtypeStruct((2, O_pad, NT), jnp.float32),
        grid=(2,),                                 # branch axis: c / nc
        in_specs=in_specs,
        out_specs=pl.BlockSpec((1, O_pad, NT), lambda br: (br, 0, 0)),
        compiler_params=pltpu.CompilerParams(
            dimension_semantics=("parallel",)),    # v7x: one branch per core
    )(*inputs)

    # Only remaining JAX glue: combine the two head partials, drop the padded
    # output rows, add bias.
    return (parts[0] + parts[1])[:O].T + params["lin_b"]


# ----------------------------------------------------------------------------
# Deterministic parameter init (mirrors the PyTorch model's shapes)
# ----------------------------------------------------------------------------
def init_tcn_params(key, num_inputs, num_channels, k):
    layers = []
    for i, c_out in enumerate(num_channels):
        c_in = num_inputs if i == 0 else num_channels[i - 1]
        key, *ks = jax.random.split(key, 7)
        p = {
            "w1": 0.01 * jax.random.normal(ks[0], (k, c_out, c_in), jnp.float32),
            "b1": 0.01 * jax.random.normal(ks[1], (c_out, 1), jnp.float32),
            "w2": 0.01 * jax.random.normal(ks[2], (k, c_out, c_out), jnp.float32),
            "b2": 0.01 * jax.random.normal(ks[3], (c_out, 1), jnp.float32),
        }
        if c_in != c_out:
            # 1x1 residual conv only when the block changes channel count.
            p["wd"] = 0.01 * jax.random.normal(ks[4], (c_out, c_in), jnp.float32)
            p["bd"] = 0.01 * jax.random.normal(ks[5], (c_out, 1), jnp.float32)
        layers.append(p)
    return key, layers


# ----------------------------------------------------------------------------
# Pure-JAX references for correctness checks
# ----------------------------------------------------------------------------
def _ref_block(x, p, k, d, bf16):
    _, _, L = x.shape
    P = (k - 1) * d
    cast = (lambda a: a.astype(jnp.bfloat16)) if bf16 else (lambda a: a)

    def conv(inp, w, b):
        ip = jnp.pad(inp, ((0, 0), (0, 0), (P, 0)))
        out = sum(jnp.einsum("oc,bcl->bol", cast(w[j]),
                             cast(ip[:, :, j * d: j * d + L]),
                             preferred_element_type=jnp.float32,
                             precision="highest")
                  for j in range(k))
        return out + b[None]

    h1 = jax.nn.relu(conv(x, p["w1"], p["b1"]))
    h2 = jax.nn.relu(conv(h1, p["w2"], p["b2"]))
    if "wd" in p:
        res = jnp.einsum("oc,bcl->bol", cast(p["wd"]), cast(x),
                         preferred_element_type=jnp.float32,
                         precision="highest") + p["bd"][None]
    else:
        res = x
    return jax.nn.relu(h2 + res)


def _ref_forward(x, params, *, eff_hist_c, eff_hist_nc, ksize_c, ksize_nc,
                 bf16_matmuls):
    B = x.shape[0]
    cast = (lambda a: a.astype(jnp.bfloat16)) if bf16_matmuls else (lambda a: a)
    x_c = x[:, :, :eff_hist_nc + 1]
    x_nc = jnp.flip(x[:, :, -(eff_hist_c + 1):], axis=2)
    h_c, h_nc = x_c, x_nc
    for i, p in enumerate(params["tcn_c"]):
        h_c = _ref_block(h_c, p, ksize_c, 2 ** i, bf16_matmuls)
    for i, p in enumerate(params["tcn_nc"]):
        h_nc = _ref_block(h_nc, p, ksize_nc, 2 ** i, bf16_matmuls)
    y1_c = jnp.concatenate([h_c[i, :, eff_hist_c:] for i in range(B)], axis=1).T
    y1_nc = jnp.concatenate([h_nc[i, :, eff_hist_nc:] for i in range(B)],
                            axis=1).T
    y1 = jnp.concatenate([y1_c, y1_nc], axis=1)
    return jnp.dot(cast(y1), cast(params["lin_w"]).T,
                   preferred_element_type=jnp.float32,
                   precision="highest") + params["lin_b"]


# ----------------------------------------------------------------------------
if __name__ == "__main__":
    # Small deterministic configuration.
    B, C_in, L = 2, 4, 16
    num_channels_c = [8, 8]
    num_channels_nc = [8, 8]
    ksize_c = ksize_nc = 3
    output_size = 1
    eff_hist_c = sum(2 * (ksize_c - 1) * (2 ** i)
                     for i in range(len(num_channels_c)))
    eff_hist_nc = sum(2 * (ksize_nc - 1) * (2 ** i)
                      for i in range(len(num_channels_nc)))

    key = jax.random.PRNGKey(0)
    key, tcn_c_params = init_tcn_params(key, C_in, num_channels_c, ksize_c)
    key, tcn_nc_params = init_tcn_params(key, C_in, num_channels_nc, ksize_nc)
    key, kw, kb, kx = jax.random.split(key, 4)
    feat = num_channels_c[-1] + num_channels_nc[-1]
    params = {
        "tcn_c": tcn_c_params,
        "tcn_nc": tcn_nc_params,
        "lin_w": 0.01 * jax.random.normal(kw, (output_size, feat), jnp.float32),
        "lin_b": 0.01 * jax.random.normal(kb, (1, output_size), jnp.float32),
    }
    x = jax.random.normal(kx, (B, C_in, L), jnp.float32)

    fwd = jax.jit(functools.partial(
        bilat_tcn_forward, eff_hist_c=eff_hist_c, eff_hist_nc=eff_hist_nc,
        ksize_c=ksize_c, ksize_nc=ksize_nc))
    out = jax.block_until_ready(fwd(x, params))

    # Tight check vs. a reference that applies the SAME mixed-precision policy
    # as the kernel (bf16 matmul operands, f32 accumulation, f32 elementwise).
    ref_mixed = _ref_forward(x, params, eff_hist_c=eff_hist_c,
                             eff_hist_nc=eff_hist_nc, ksize_c=ksize_c,
                             ksize_nc=ksize_nc, bf16_matmuls=True)
    # Loose check vs. the original all-f32 module semantics (bf16 MXU inputs
    # introduce ~1e-4-level deviations at these magnitudes).
    ref_f32 = _ref_forward(x, params, eff_hist_c=eff_hist_c,
                           eff_hist_nc=eff_hist_nc, ksize_c=ksize_c,
                           ksize_nc=ksize_nc, bf16_matmuls=False)
    ref_mixed = jax.block_until_ready(ref_mixed)
    ref_f32 = jax.block_until_ready(ref_f32)

    n_frames = (eff_hist_nc + 1) - eff_hist_c
    assert out.shape == (B * n_frames, output_size), out.shape
    np.testing.assert_allclose(np.asarray(out), np.asarray(ref_mixed),
                               rtol=5e-3, atol=1e-4)
    np.testing.assert_allclose(np.asarray(out), np.asarray(ref_f32),
                               rtol=5e-2, atol=5e-3)
    print("KERNEL_OK")
</pallas_src>

<mosaic_0001>
module attributes {stable_mosaic.version = 11 : i64} {
  func.func @kernel(%arg0: i32, %arg1: memref<8x34xf32, #tpu.memory_space<vmem>>, %arg2: memref<8x34xf32, #tpu.memory_space<vmem>>, %arg3: memref<8x24xbf16, #tpu.memory_space<vmem>>, %arg4: memref<8x1xf32, #tpu.memory_space<vmem>>, %arg5: memref<8x24xbf16, #tpu.memory_space<vmem>>, %arg6: memref<8x1xf32, #tpu.memory_space<vmem>>, %arg7: memref<8x8xbf16, #tpu.memory_space<vmem>>, %arg8: memref<8x1xf32, #tpu.memory_space<vmem>>, %arg9: memref<8x24xbf16, #tpu.memory_space<vmem>>, %arg10: memref<8x1xf32, #tpu.memory_space<vmem>>, %arg11: memref<8x24xbf16, #tpu.memory_space<vmem>>, %arg12: memref<8x1xf32, #tpu.memory_space<vmem>>, %arg13: memref<8x24xbf16, #tpu.memory_space<vmem>>, %arg14: memref<8x1xf32, #tpu.memory_space<vmem>>, %arg15: memref<8x24xbf16, #tpu.memory_space<vmem>>, %arg16: memref<8x1xf32, #tpu.memory_space<vmem>>, %arg17: memref<8x8xbf16, #tpu.memory_space<vmem>>, %arg18: memref<8x1xf32, #tpu.memory_space<vmem>>, %arg19: memref<8x24xbf16, #tpu.memory_space<vmem>>, %arg20: memref<8x1xf32, #tpu.memory_space<vmem>>, %arg21: memref<8x24xbf16, #tpu.memory_space<vmem>>, %arg22: memref<8x1xf32, #tpu.memory_space<vmem>>, %arg23: memref<8x8xbf16, #tpu.memory_space<vmem>>, %arg24: memref<8x8xbf16, #tpu.memory_space<vmem>>, %arg25: memref<1x8x2xf32, #tpu.memory_space<vmem>>) attributes {dimension_semantics = [#tpu.dimension_semantics<parallel>], iteration_bounds = array<i64: 2>, scalar_prefetch = 0 : i64, scratch_operands = 0 : i64, tpu.core_type = #tpu.core_type<tc>, window_params = [{pipeline_mode = #tpu.pipeline_mode<synchronous>, transform_indices = @transform_0, window_bounds = array<i64: 8, 34>}, {pipeline_mode = #tpu.pipeline_mode<synchronous>, transform_indices = @transform_1, window_bounds = array<i64: 8, 34>}, {pipeline_mode = #tpu.pipeline_mode<synchronous>, transform_indices = @transform_2, window_bounds = array<i64: 8, 24>}, {pipeline_mode = #tpu.pipeline_mode<synchronous>, transform_indices = @transform_3, window_bounds = array<i64: 8, 1>}, {pipeline_mode = #tpu.pipeline_mode<synchronous>, transform_indices = @transform_4, window_bounds = array<i64: 8, 24>}, {pipeline_mode = #tpu.pipeline_mode<synchronous>, transform_indices = @transform_5, window_bounds = array<i64: 8, 1>}, {pipeline_mode = #tpu.pipeline_mode<synchronous>, transform_indices = @transform_6, window_bounds = array<i64: 8, 8>}, {pipeline_mode = #tpu.pipeline_mode<synchronous>, transform_indices = @transform_7, window_bounds = array<i64: 8, 1>}, {pipeline_mode = #tpu.pipeline_mode<synchronous>, transform_indices = @transform_8, window_bounds = array<i64: 8, 24>}, {pipeline_mode = #tpu.pipeline_mode<synchronous>, transform_indices = @transform_9, window_bounds = array<i64: 8, 1>}, {pipeline_mode = #tpu.pipeline_mode<synchronous>, transform_indices = @transform_10, window_bounds = array<i64: 8, 24>}, {pipeline_mode = #tpu.pipeline_mode<synchronous>, transform_indices = @transform_11, window_bounds = array<i64: 8, 1>}, {pipeline_mode = #tpu.pipeline_mode<synchronous>, transform_indices = @transform_12, window_bounds = array<i64: 8, 24>}, {pipeline_mode = #tpu.pipeline_mode<synchronous>, transform_indices = @transform_13, window_bounds = array<i64: 8, 1>}, {pipeline_mode = #tpu.pipeline_mode<synchronous>, transform_indices = @transform_14, window_bounds = array<i64: 8, 24>}, {pipeline_mode = #tpu.pipeline_mode<synchronous>, transform_indices = @transform_15, window_bounds = array<i64: 8, 1>}, {pipeline_mode = #tpu.pipeline_mode<synchronous>, transform_indices = @transform_16, window_bounds = array<i64: 8, 8>}, {pipeline_mode = #tpu.pipeline_mode<synchronous>, transform_indices = @transform_17, window_bounds = array<i64: 8, 1>}, {pipeline_mode = #tpu.pipeline_mode<synchronous>, transform_indices = @transform_18, window_bounds = array<i64: 8, 24>}, {pipeline_mode = #tpu.pipeline_mode<synchronous>, transform_indices = @transform_19, window_bounds = array<i64: 8, 1>}, {pipeline_mode = #tpu.pipeline_mode<synchronous>, transform_indices = @transform_20, window_bounds = array<i64: 8, 24>}, {pipeline_mode = #tpu.pipeline_mode<synchronous>, transform_indices = @transform_21, window_bounds = array<i64: 8, 1>}, {pipeline_mode = #tpu.pipeline_mode<synchronous>, transform_indices = @transform_22, window_bounds = array<i64: 8, 8>}, {pipeline_mode = #tpu.pipeline_mode<synchronous>, transform_indices = @transform_23, window_bounds = array<i64: 8, 8>}, {transform_indices = @transform_24, window_bounds = array<i64: 1, 8, 2>}]} {
    %c0_i32 = arith.constant 0 : i32
    %0 = arith.cmpi eq, %arg0, %c0_i32 : i32
    %1 = arith.extui %0 : i1 to i32
    %c0_i32_0 = arith.constant 0 : i32
    %2 = arith.cmpi ne, %1, %c0_i32_0 : i32
    scf.if %2 {
      %6 = tpu.iota {dimensions = array<i32: 1>} : vector<1x34xi32>
      %c4_i32 = arith.constant 4 : i32
      %7 = vector.broadcast %c4_i32 : i32 to vector<1x34xi32>
      %8 = arith.cmpi sge, %6, %7 : vector<1x34xi32>
      %c17_i32 = arith.constant 17 : i32
      %9 = vector.broadcast %c17_i32 : i32 to vector<1x34xi32>
      %10 = arith.cmpi slt, %6, %9 : vector<1x34xi32>
      %11 = arith.andi %8, %10 : vector<1x34xi1>
      %c21_i32 = arith.constant 21 : i32
      %12 = vector.broadcast %c21_i32 : i32 to vector<1x34xi32>
      %13 = arith.cmpi sge, %6, %12 : vector<1x34xi32>
      %c34_i32 = arith.constant 34 : i32
      %14 = vector.broadcast %c34_i32 : i32 to vector<1x34xi32>
      %15 = arith.cmpi slt, %6, %14 : vector<1x34xi32>
      %16 = arith.andi %13, %15 : vector<1x34xi1>
      %17 = arith.ori %11, %16 : vector<1x34xi1>
      %cst = arith.constant 1.000000e+00 : f32
      %cst_2 = arith.constant 0.000000e+00 : f32
      %18 = vector.broadcast %cst : f32 to vector<1x34xf32>
      %19 = vector.broadcast %cst_2 : f32 to vector<1x34xf32>
      %20 = arith.select %17, %18, %19 : vector<1x34xi1>, vector<1x34xf32>
      %c0 = arith.constant 0 : index
      %c0_3 = arith.constant 0 : index
      %21 = vector.load %arg1[%c0, %c0_3] : memref<8x34xf32, #tpu.memory_space<vmem>>, vector<8x34xf32>
      %c0_4 = arith.constant 0 : index
      %c0_5 = arith.constant 0 : index
      %22 = vector.load %arg3[%c0_4, %c0_5] : memref<8x24xbf16, #tpu.memory_space<vmem>>, vector<8x24xbf16>
      %c0_6 = arith.constant 0 : index
      %c0_7 = arith.constant 0 : index
      %23 = vector.load %arg4[%c0_6, %c0_7] : memref<8x1xf32, #tpu.memory_space<vmem>>, vector<8x1xf32>
      %c0_8 = arith.constant 0 : index
      %c0_9 = arith.constant 0 : index
      %24 = vector.load %arg5[%c0_8, %c0_9] : memref<8x24xbf16, #tpu.memory_space<vmem>>, vector<8x24xbf16>
      %c0_10 = arith.constant 0 : index
      %c0_11 = arith.constant 0 : index
      %25 = vector.load %arg6[%c0_10, %c0_11] : memref<8x1xf32, #tpu.memory_space<vmem>>, vector<8x1xf32>
      %26 = arith.truncf %21 : vector<8x34xf32> to vector<8x34xbf16>
      %cst_12 = arith.constant 0.000000e+00 : bf16
      %27 = vector.broadcast %cst_12 : bf16 to vector<8x2xbf16>
      %28 = tpu.concatenate %27, %26 in 1 : vector<8x2xbf16>, vector<8x34xbf16> -> vector<8x36xbf16>
      %29 = vector.extract_strided_slice %28 {offsets = [0, 0], sizes = [8, 34], strides = [1, 1]} : vector<8x36xbf16> to vector<8x34xbf16>
      %30 = vector.extract_strided_slice %28 {offsets = [0, 1], sizes = [8, 34], strides = [1, 1]} : vector<8x36xbf16> to vector<8x34xbf16>
      %31 = vector.extract_strided_slice %28 {offsets = [0, 2], sizes = [8, 34], strides = [1, 1]} : vector<8x36xbf16> to vector<8x34xbf16>
      %32 = tpu.concatenate %29, %30, %31 in 0 : vector<8x34xbf16>, vector<8x34xbf16>, vector<8x34xbf16> -> vector<24x34xbf16>
      %cst_13 = arith.constant dense<0.000000e+00> : vector<8x34xf32>
      %33 = tpu.matmul %22, %32, %cst_13 {dimension_numbers = #tpu.dot_dimension_numbers<[1], [0], [0], [1], [0, 0, 1, 1], [], []>} : vector<8x24xbf16>, vector<24x34xbf16>, vector<8x34xf32> -> vector<8x34xf32>
      %34 = vector.broadcast %23 : vector<8x1xf32> to vector<8x34xf32>
      %35 = arith.addf %33, %34 : vector<8x34xf32>
      %cst_14 = arith.constant 0.000000e+00 : f32
      %36 = vector.broadcast %cst_14 : f32 to vector<8x34xf32>
      %37 = arith.maximumf %35, %36 : vector<8x34xf32>
      %38 = vector.broadcast %20 : vector<1x34xf32> to vector<8x34xf32>
      %39 = arith.mulf %37, %38 : vector<8x34xf32>
      %40 = arith.truncf %39 : vector<8x34xf32> to vector<8x34xbf16>
      %cst_15 = arith.constant 0.000000e+00 : bf16
      %41 = vector.broadcast %cst_15 : bf16 to vector<8x2xbf16>
      %42 = tpu.concatenate %41, %40 in 1 : vector<8x2xbf16>, vector<8x34xbf16> -> vector<8x36xbf16>
      %43 = vector.extract_strided_slice %42 {offsets = [0, 0], sizes = [8, 34], strides = [1, 1]} : vector<8x36xbf16> to vector<8x34xbf16>
      %44 = vector.extract_strided_slice %42 {offsets = [0, 1], sizes = [8, 34], strides = [1, 1]} : vector<8x36xbf16> to vector<8x34xbf16>
      %45 = vector.extract_strided_slice %42 {offsets = [0, 2], sizes = [8, 34], strides = [1, 1]} : vector<8x36xbf16> to vector<8x34xbf16>
      %46 = tpu.concatenate %43, %44, %45 in 0 : vector<8x34xbf16>, vector<8x34xbf16>, vector<8x34xbf16> -> vector<24x34xbf16>
      %cst_16 = arith.constant dense<0.000000e+00> : vector<8x34xf32>
      %47 = tpu.matmul %24, %46, %cst_16 {dimension_numbers = #tpu.dot_dimension_numbers<[1], [0], [0], [1], [0, 0, 1, 1], [], []>} : vector<8x24xbf16>, vector<24x34xbf16>, vector<8x34xf32> -> vector<8x34xf32>
      %48 = vector.broadcast %25 : vector<8x1xf32> to vector<8x34xf32>
      %49 = arith.addf %47, %48 : vector<8x34xf32>
      %cst_17 = arith.constant 0.000000e+00 : f32
      %50 = vector.broadcast %cst_17 : f32 to vector<8x34xf32>
      %51 = arith.maximumf %49, %50 : vector<8x34xf32>
      %c0_18 = arith.constant 0 : index
      %c0_19 = arith.constant 0 : index
      %52 = vector.load %arg7[%c0_18, %c0_19] : memref<8x8xbf16, #tpu.memory_space<vmem>>, vector<8x8xbf16>
      %c0_20 = arith.constant 0 : index
      %c0_21 = arith.constant 0 : index
      %53 = vector.load %arg8[%c0_20, %c0_21] : memref<8x1xf32, #tpu.memory_space<vmem>>, vector<8x1xf32>
      %cst_22 = arith.constant dense<0.000000e+00> : vector<8x34xf32>
      %54 = tpu.matmul %52, %26, %cst_22 {dimension_numbers = #tpu.dot_dimension_numbers<[1], [0], [0], [1], [0, 0, 1, 1], [], []>} : vector<8x8xbf16>, vector<8x34xbf16>, vector<8x34xf32> -> vector<8x34xf32>
      %55 = vector.broadcast %53 : vector<8x1xf32> to vector<8x34xf32>
      %56 = arith.addf %54, %55 : vector<8x34xf32>
      %57 = arith.addf %51, %56 : vector<8x34xf32>
      %cst_23 = arith.constant 0.000000e+00 : f32
      %58 = vector.broadcast %cst_23 : f32 to vector<8x34xf32>
      %59 = arith.maximumf %57, %58 : vector<8x34xf32>
      %60 = vector.broadcast %20 : vector<1x34xf32> to vector<8x34xf32>
      %61 = arith.mulf %59, %60 : vector<8x34xf32>
      %c0_24 = arith.constant 0 : index
      %c0_25 = arith.constant 0 : index
      %62 = vector.load %arg9[%c0_24, %c0_25] : memref<8x24xbf16, #tpu.memory_space<vmem>>, vector<8x24xbf16>
      %c0_26 = arith.constant 0 : index
      %c0_27 = arith.constant 0 : index
      %63 = vector.load %arg10[%c0_26, %c0_27] : memref<8x1xf32, #tpu.memory_space<vmem>>, vector<8x1xf32>
      %c0_28 = arith.constant 0 : index
      %c0_29 = arith.constant 0 : index
      %64 = vector.load %arg11[%c0_28, %c0_29] : memref<8x24xbf16, #tpu.memory_space<vmem>>, vector<8x24xbf16>
      %c0_30 = arith.constant 0 : index
      %c0_31 = arith.constant 0 : index
      %65 = vector.load %arg12[%c0_30, %c0_31] : memref<8x1xf32, #tpu.memory_space<vmem>>, vector<8x1xf32>
      %66 = arith.truncf %61 : vector<8x34xf32> to vector<8x34xbf16>
      %cst_32 = arith.constant 0.000000e+00 : bf16
      %67 = vector.broadcast %cst_32 : bf16 to vector<8x4xbf16>
      %68 = tpu.concatenate %67, %66 in 1 : vector<8x4xbf16>, vector<8x34xbf16> -> vector<8x38xbf16>
      %69 = vector.extract_strided_slice %68 {offsets = [0, 0], sizes = [8, 34], strides = [1, 1]} : vector<8x38xbf16> to vector<8x34xbf16>
      %70 = vector.extract_strided_slice %68 {offsets = [0, 2], sizes = [8, 34], strides = [1, 1]} : vector<8x38xbf16> to vector<8x34xbf16>
      %71 = vector.extract_strided_slice %68 {offsets = [0, 4], sizes = [8, 34], strides = [1, 1]} : vector<8x38xbf16> to vector<8x34xbf16>
      %72 = tpu.concatenate %69, %70, %71 in 0 : vector<8x34xbf16>, vector<8x34xbf16>, vector<8x34xbf16> -> vector<24x34xbf16>
      %cst_33 = arith.constant dense<0.000000e+00> : vector<8x34xf32>
      %73 = tpu.matmul %62, %72, %cst_33 {dimension_numbers = #tpu.dot_dimension_numbers<[1], [0], [0], [1], [0, 0, 1, 1], [], []>} : vector<8x24xbf16>, vector<24x34xbf16>, vector<8x34xf32> -> vector<8x34xf32>
      %74 = vector.broadcast %63 : vector<8x1xf32> to vector<8x34xf32>
      %75 = arith.addf %73, %74 : vector<8x34xf32>
      %cst_34 = arith.constant 0.000000e+00 : f32
      %76 = vector.broadcast %cst_34 : f32 to vector<8x34xf32>
      %77 = arith.maximumf %75, %76 : vector<8x34xf32>
      %78 = vector.broadcast %20 : vector<1x34xf32> to vector<8x34xf32>
      %79 = arith.mulf %77, %78 : vector<8x34xf32>
      %80 = arith.truncf %79 : vector<8x34xf32> to vector<8x34xbf16>
      %cst_35 = arith.constant 0.000000e+00 : bf16
      %81 = vector.broadcast %cst_35 : bf16 to vector<8x4xbf16>
      %82 = tpu.concatenate %81, %80 in 1 : vector<8x4xbf16>, vector<8x34xbf16> -> vector<8x38xbf16>
      %83 = vector.extract_strided_slice %82 {offsets = [0, 0], sizes = [8, 34], strides = [1, 1]} : vector<8x38xbf16> to vector<8x34xbf16>
      %84 = vector.extract_strided_slice %82 {offsets = [0, 2], sizes = [8, 34], strides = [1, 1]} : vector<8x38xbf16> to vector<8x34xbf16>
      %85 = vector.extract_strided_slice %82 {offsets = [0, 4], sizes = [8, 34], strides = [1, 1]} : vector<8x38xbf16> to vector<8x34xbf16>
      %86 = tpu.concatenate %83, %84, %85 in 0 : vector<8x34xbf16>, vector<8x34xbf16>, vector<8x34xbf16> -> vector<24x34xbf16>
      %cst_36 = arith.constant dense<0.000000e+00> : vector<8x34xf32>
      %87 = tpu.matmul %64, %86, %cst_36 {dimension_numbers = #tpu.dot_dimension_numbers<[1], [0], [0], [1], [0, 0, 1, 1], [], []>} : vector<8x24xbf16>, vector<24x34xbf16>, vector<8x34xf32> -> vector<8x34xf32>
      %88 = vector.broadcast %65 : vector<8x1xf32> to vector<8x34xf32>
      %89 = arith.addf %87, %88 : vector<8x34xf32>
      %cst_37 = arith.constant 0.000000e+00 : f32
      %90 = vector.broadcast %cst_37 : f32 to vector<8x34xf32>
      %91 = arith.maximumf %89, %90 : vector<8x34xf32>
      %92 = arith.addf %91, %61 : vector<8x34xf32>
      %cst_38 = arith.constant 0.000000e+00 : f32
      %93 = vector.broadcast %cst_38 : f32 to vector<8x34xf32>
      %94 = arith.maximumf %92, %93 : vector<8x34xf32>
      %95 = vector.broadcast %20 : vector<1x34xf32> to vector<8x34xf32>
      %96 = arith.mulf %94, %95 : vector<8x34xf32>
      %97 = vector.extract_strided_slice %96 {offsets = [0, 16], sizes = [8, 1], strides = [1, 1]} : vector<8x34xf32> to vector<8x1xf32>
      %98 = vector.extract_strided_slice %96 {offsets = [0, 33], sizes = [8, 1], strides = [1, 1]} : vector<8x34xf32> to vector<8x1xf32>
      %99 = tpu.concatenate %97, %98 in 1 : vector<8x1xf32>, vector<8x1xf32> -> vector<8x2xf32>
      %c0_39 = arith.constant 0 : index
      %c0_40 = arith.constant 0 : index
      %100 = vector.load %arg23[%c0_39, %c0_40] : memref<8x8xbf16, #tpu.memory_space<vmem>>, vector<8x8xbf16>
      %101 = arith.truncf %99 : vector<8x2xf32> to vector<8x2xbf16>
      %cst_41 = arith.constant dense<0.000000e+00> : vector<8x2xf32>
      %102 = tpu.matmul %100, %101, %cst_41 {dimension_numbers = #tpu.dot_dimension_numbers<[1], [0], [0], [1], [0, 0, 1, 1], [], []>} : vector<8x8xbf16>, vector<8x2xbf16>, vector<8x2xf32> -> vector<8x2xf32>
      %c0_42 = arith.constant 0 : index
      %c0_43 = arith.constant 0 : index
      %c0_44 = arith.constant 0 : index
      %103 = vector.load %arg25[%c0_42, %c0_43, %c0_44] : memref<1x8x2xf32, #tpu.memory_space<vmem>>, vector<1x8x2xf32>
      %104 = vector.shape_cast %103 : vector<1x8x2xf32> to vector<8x2xf32>
      %105 = vector.shape_cast %102 : vector<8x2xf32> to vector<1x8x2xf32>
      tpu.vector_store %arg25[%c0_42, %c0_43, %c0_44], %105 {strides = array<i32>} : memref<1x8x2xf32, #tpu.memory_space<vmem>>, vector<1x8x2xf32>,
    } else {
    }
    %c1_i32 = arith.constant 1 : i32
    %3 = arith.cmpi eq, %arg0, %c1_i32 : i32
    %4 = arith.extui %3 : i1 to i32
    %c0_i32_1 = arith.constant 0 : i32
    %5 = arith.cmpi ne, %4, %c0_i32_1 : i32
    scf.if %5 {
      %6 = tpu.iota {dimensions = array<i32: 1>} : vector<1x34xi32>
      %c4_i32 = arith.constant 4 : i32
      %7 = vector.broadcast %c4_i32 : i32 to vector<1x34xi32>
      %8 = arith.cmpi sge, %6, %7 : vector<1x34xi32>
      %c17_i32 = arith.constant 17 : i32
      %9 = vector.broadcast %c17_i32 : i32 to vector<1x34xi32>
      %10 = arith.cmpi slt, %6, %9 : vector<1x34xi32>
      %11 = arith.andi %8, %10 : vector<1x34xi1>
      %c21_i32 = arith.constant 21 : i32
      %12 = vector.broadcast %c21_i32 : i32 to vector<1x34xi32>
      %13 = arith.cmpi sge, %6, %12 : vector<1x34xi32>
      %c34_i32 = arith.constant 34 : i32
      %14 = vector.broadcast %c34_i32 : i32 to vector<1x34xi32>
      %15 = arith.cmpi slt, %6, %14 : vector<1x34xi32>
      %16 = arith.andi %13, %15 : vector<1x34xi1>
      %17 = arith.ori %11, %16 : vector<1x34xi1>
      %cst = arith.constant 1.000000e+00 : f32
      %cst_2 = arith.constant 0.000000e+00 : f32
      %18 = vector.broadcast %cst : f32 to vector<1x34xf32>
      %19 = vector.broadcast %cst_2 : f32 to vector<1x34xf32>
      %20 = arith.select %17, %18, %19 : vector<1x34xi1>, vector<1x34xf32>
      %c0 = arith.constant 0 : index
      %c0_3 = arith.constant 0 : index
      %21 = vector.load %arg2[%c0, %c0_3] : memref<8x34xf32, #tpu.memory_space<vmem>>, vector<8x34xf32>
      %c0_4 = arith.constant 0 : index
      %c0_5 = arith.constant 0 : index
      %22 = vector.load %arg13[%c0_4, %c0_5] : memref<8x24xbf16, #tpu.memory_space<vmem>>, vector<8x24xbf16>
      %c0_6 = arith.constant 0 : index
      %c0_7 = arith.constant 0 : index
      %23 = vector.load %arg14[%c0_6, %c0_7] : memref<8x1xf32, #tpu.memory_space<vmem>>, vector<8x1xf32>
      %c0_8 = arith.constant 0 : index
      %c0_9 = arith.constant 0 : index
      %24 = vector.load %arg15[%c0_8, %c0_9] : memref<8x24xbf16, #tpu.memory_space<vmem>>, vector<8x24xbf16>
      %c0_10 = arith.constant 0 : index
      %c0_11 = arith.constant 0 : index
      %25 = vector.load %arg16[%c0_10, %c0_11] : memref<8x1xf32, #tpu.memory_space<vmem>>, vector<8x1xf32>
      %26 = arith.truncf %21 : vector<8x34xf32> to vector<8x34xbf16>
      %cst_12 = arith.constant 0.000000e+00 : bf16
      %27 = vector.broadcast %cst_12 : bf16 to vector<8x2xbf16>
      %28 = tpu.concatenate %27, %26 in 1 : vector<8x2xbf16>, vector<8x34xbf16> -> vector<8x36xbf16>
      %29 = vector.extract_strided_slice %28 {offsets = [0, 0], sizes = [8, 34], strides = [1, 1]} : vector<8x36xbf16> to vector<8x34xbf16>
      %30 = vector.extract_strided_slice %28 {offsets = [0, 1], sizes = [8, 34], strides = [1, 1]} : vector<8x36xbf16> to vector<8x34xbf16>
      %31 = vector.extract_strided_slice %28 {offsets = [0, 2], sizes = [8, 34], strides = [1, 1]} : vector<8x36xbf16> to vector<8x34xbf16>
      %32 = tpu.concatenate %29, %30, %31 in 0 : vector<8x34xbf16>, vector<8x34xbf16>, vector<8x34xbf16> -> vector<24x34xbf16>
      %cst_13 = arith.constant dense<0.000000e+00> : vector<8x34xf32>
      %33 = tpu.matmul %22, %32, %cst_13 {dimension_numbers = #tpu.dot_dimension_numbers<[1], [0], [0], [1], [0, 0, 1, 1], [], []>} : vector<8x24xbf16>, vector<24x34xbf16>, vector<8x34xf32> -> vector<8x34xf32>
      %34 = vector.broadcast %23 : vector<8x1xf32> to vector<8x34xf32>
      %35 = arith.addf %33, %34 : vector<8x34xf32>
      %cst_14 = arith.constant 0.000000e+00 : f32
      %36 = vector.broadcast %cst_14 : f32 to vector<8x34xf32>
      %37 = arith.maximumf %35, %36 : vector<8x34xf32>
      %38 = vector.broadcast %20 : vector<1x34xf32> to vector<8x34xf32>
      %39 = arith.mulf %37, %38 : vector<8x34xf32>
      %40 = arith.truncf %39 : vector<8x34xf32> to vector<8x34xbf16>
      %cst_15 = arith.constant 0.000000e+00 : bf16
      %41 = vector.broadcast %cst_15 : bf16 to vector<8x2xbf16>
      %42 = tpu.concatenate %41, %40 in 1 : vector<8x2xbf16>, vector<8x34xbf16> -> vector<8x36xbf16>
      %43 = vector.extract_strided_slice %42 {offsets = [0, 0], sizes = [8, 34], strides = [1, 1]} : vector<8x36xbf16> to vector<8x34xbf16>
      %44 = vector.extract_strided_slice %42 {offsets = [0, 1], sizes = [8, 34], strides = [1, 1]} : vector<8x36xbf16> to vector<8x34xbf16>
      %45 = vector.extract_strided_slice %42 {offsets = [0, 2], sizes = [8, 34], strides = [1, 1]} : vector<8x36xbf16> to vector<8x34xbf16>
      %46 = tpu.concatenate %43, %44, %45 in 0 : vector<8x34xbf16>, vector<8x34xbf16>, vector<8x34xbf16> -> vector<24x34xbf16>
      %cst_16 = arith.constant dense<0.000000e+00> : vector<8x34xf32>
      %47 = tpu.matmul %24, %46, %cst_16 {dimension_numbers = #tpu.dot_dimension_numbers<[1], [0], [0], [1], [0, 0, 1, 1], [], []>} : vector<8x24xbf16>, vector<24x34xbf16>, vector<8x34xf32> -> vector<8x34xf32>
      %48 = vector.broadcast %25 : vector<8x1xf32> to vector<8x34xf32>
      %49 = arith.addf %47, %48 : vector<8x34xf32>
      %cst_17 = arith.constant 0.000000e+00 : f32
      %50 = vector.broadcast %cst_17 : f32 to vector<8x34xf32>
      %51 = arith.maximumf %49, %50 : vector<8x34xf32>
      %c0_18 = arith.constant 0 : index
      %c0_19 = arith.constant 0 : index
      %52 = vector.load %arg17[%c0_18, %c0_19] : memref<8x8xbf16, #tpu.memory_space<vmem>>, vector<8x8xbf16>
      %c0_20 = arith.constant 0 : index
      %c0_21 = arith.constant 0 : index
      %53 = vector.load %arg18[%c0_20, %c0_21] : memref<8x1xf32, #tpu.memory_space<vmem>>, vector<8x1xf32>
      %cst_22 = arith.constant dense<0.000000e+00> : vector<8x34xf32>
      %54 = tpu.matmul %52, %26, %cst_22 {dimension_numbers = #tpu.dot_dimension_numbers<[1], [0], [0], [1], [0, 0, 1, 1], [], []>} : vector<8x8xbf16>, vector<8x34xbf16>, vector<8x34xf32> -> vector<8x34xf32>
      %55 = vector.broadcast %53 : vector<8x1xf32> to vector<8x34xf32>
      %56 = arith.addf %54, %55 : vector<8x34xf32>
      %57 = arith.addf %51, %56 : vector<8x34xf32>
      %cst_23 = arith.constant 0.000000e+00 : f32
      %58 = vector.broadcast %cst_23 : f32 to vector<8x34xf32>
      %59 = arith.maximumf %57, %58 : vector<8x34xf32>
      %60 = vector.broadcast %20 : vector<1x34xf32> to vector<8x34xf32>
      %61 = arith.mulf %59, %60 : vector<8x34xf32>
      %c0_24 = arith.constant 0 : index
      %c0_25 = arith.constant 0 : index
      %62 = vector.load %arg19[%c0_24, %c0_25] : memref<8x24xbf16, #tpu.memory_space<vmem>>, vector<8x24xbf16>
      %c0_26 = arith.constant 0 : index
      %c0_27 = arith.constant 0 : index
      %63 = vector.load %arg20[%c0_26, %c0_27] : memref<8x1xf32, #tpu.memory_space<vmem>>, vector<8x1xf32>
      %c0_28 = arith.constant 0 : index
      %c0_29 = arith.constant 0 : index
      %64 = vector.load %arg21[%c0_28, %c0_29] : memref<8x24xbf16, #tpu.memory_space<vmem>>, vector<8x24xbf16>
      %c0_30 = arith.constant 0 : index
      %c0_31 = arith.constant 0 : index
      %65 = vector.load %arg22[%c0_30, %c0_31] : memref<8x1xf32, #tpu.memory_space<vmem>>, vector<8x1xf32>
      %66 = arith.truncf %61 : vector<8x34xf32> to vector<8x34xbf16>
      %cst_32 = arith.constant 0.000000e+00 : bf16
      %67 = vector.broadcast %cst_32 : bf16 to vector<8x4xbf16>
      %68 = tpu.concatenate %67, %66 in 1 : vector<8x4xbf16>, vector<8x34xbf16> -> vector<8x38xbf16>
      %69 = vector.extract_strided_slice %68 {offsets = [0, 0], sizes = [8, 34], strides = [1, 1]} : vector<8x38xbf16> to vector<8x34xbf16>
      %70 = vector.extract_strided_slice %68 {offsets = [0, 2], sizes = [8, 34], strides = [1, 1]} : vector<8x38xbf16> to vector<8x34xbf16>
      %71 = vector.extract_strided_slice %68 {offsets = [0, 4], sizes = [8, 34], strides = [1, 1]} : vector<8x38xbf16> to vector<8x34xbf16>
      %72 = tpu.concatenate %69, %70, %71 in 0 : vector<8x34xbf16>, vector<8x34xbf16>, vector<8x34xbf16> -> vector<24x34xbf16>
      %cst_33 = arith.constant dense<0.000000e+00> : vector<8x34xf32>
      %73 = tpu.matmul %62, %72, %cst_33 {dimension_numbers = #tpu.dot_dimension_numbers<[1], [0], [0], [1], [0, 0, 1, 1], [], []>} : vector<8x24xbf16>, vector<24x34xbf16>, vector<8x34xf32> -> vector<8x34xf32>
      %74 = vector.broadcast %63 : vector<8x1xf32> to vector<8x34xf32>
      %75 = arith.addf %73, %74 : vector<8x34xf32>
      %cst_34 = arith.constant 0.000000e+00 : f32
      %76 = vector.broadcast %cst_34 : f32 to vector<8x34xf32>
      %77 = arith.maximumf %75, %76 : vector<8x34xf32>
      %78 = vector.broadcast %20 : vector<1x34xf32> to vector<8x34xf32>
      %79 = arith.mulf %77, %78 : vector<8x34xf32>
      %80 = arith.truncf %79 : vector<8x34xf32> to vector<8x34xbf16>
      %cst_35 = arith.constant 0.000000e+00 : bf16
      %81 = vector.broadcast %cst_35 : bf16 to vector<8x4xbf16>
      %82 = tpu.concatenate %81, %80 in 1 : vector<8x4xbf16>, vector<8x34xbf16> -> vector<8x38xbf16>
      %83 = vector.extract_strided_slice %82 {offsets = [0, 0], sizes = [8, 34], strides = [1, 1]} : vector<8x38xbf16> to vector<8x34xbf16>
      %84 = vector.extract_strided_slice %82 {offsets = [0, 2], sizes = [8, 34], strides = [1, 1]} : vector<8x38xbf16> to vector<8x34xbf16>
      %85 = vector.extract_strided_slice %82 {offsets = [0, 4], sizes = [8, 34], strides = [1, 1]} : vector<8x38xbf16> to vector<8x34xbf16>
      %86 = tpu.concatenate %83, %84, %85 in 0 : vector<8x34xbf16>, vector<8x34xbf16>, vector<8x34xbf16> -> vector<24x34xbf16>
      %cst_36 = arith.constant dense<0.000000e+00> : vector<8x34xf32>
      %87 = tpu.matmul %64, %86, %cst_36 {dimension_numbers = #tpu.dot_dimension_numbers<[1], [0], [0], [1], [0, 0, 1, 1], [], []>} : vector<8x24xbf16>, vector<24x34xbf16>, vector<8x34xf32> -> vector<8x34xf32>
      %88 = vector.broadcast %65 : vector<8x1xf32> to vector<8x34xf32>
      %89 = arith.addf %87, %88 : vector<8x34xf32>
      %cst_37 = arith.constant 0.000000e+00 : f32
      %90 = vector.broadcast %cst_37 : f32 to vector<8x34xf32>
      %91 = arith.maximumf %89, %90 : vector<8x34xf32>
      %92 = arith.addf %91, %61 : vector<8x34xf32>
      %cst_38 = arith.constant 0.000000e+00 : f32
      %93 = vector.broadcast %cst_38 : f32 to vector<8x34xf32>
      %94 = arith.maximumf %92, %93 : vector<8x34xf32>
      %95 = vector.broadcast %20 : vector<1x34xf32> to vector<8x34xf32>
      %96 = arith.mulf %94, %95 : vector<8x34xf32>
      %97 = vector.extract_strided_slice %96 {offsets = [0, 16], sizes = [8, 1], strides = [1, 1]} : vector<8x34xf32> to vector<8x1xf32>
      %98 = vector.extract_strided_slice %96 {offsets = [0, 33], sizes = [8, 1], strides = [1, 1]} : vector<8x34xf32> to vector<8x1xf32>
      %99 = tpu.concatenate %97, %98 in 1 : vector<8x1xf32>, vector<8x1xf32> -> vector<8x2xf32>
      %c0_39 = arith.constant 0 : index
      %c0_40 = arith.constant 0 : index
      %100 = vector.load %arg24[%c0_39, %c0_40] : memref<8x8xbf16, #tpu.memory_space<vmem>>, vector<8x8xbf16>
      %101 = arith.truncf %99 : vector<8x2xf32> to vector<8x2xbf16>
      %cst_41 = arith.constant dense<0.000000e+00> : vector<8x2xf32>
      %102 = tpu.matmul %100, %101, %cst_41 {dimension_numbers = #tpu.dot_dimension_numbers<[1], [0], [0], [1], [0, 0, 1, 1], [], []>} : vector<8x8xbf16>, vector<8x2xbf16>, vector<8x2xf32> -> vector<8x2xf32>
      %c0_42 = arith.constant 0 : index
      %c0_43 = arith.constant 0 : index
      %c0_44 = arith.constant 0 : index
      %103 = vector.load %arg25[%c0_42, %c0_43, %c0_44] : memref<1x8x2xf32, #tpu.memory_space<vmem>>, vector<1x8x2xf32>
      %104 = vector.shape_cast %103 : vector<1x8x2xf32> to vector<8x2xf32>
      %105 = vector.shape_cast %102 : vector<8x2xf32> to vector<1x8x2xf32>
      tpu.vector_store %arg25[%c0_42, %c0_43, %c0_44], %105 {strides = array<i32>} : memref<1x8x2xf32, #tpu.memory_space<vmem>>, vector<1x8x2xf32>,
    } else {
    }
    return
  }
  func.func @transform_0(%arg0: i32) -> (i32, i32) {
    %c0_i32 = arith.constant 0 : i32
    %c0_i32_0 = arith.constant 0 : i32
    %c0_i32_1 = arith.constant 0 : i32
    return %c0_i32, %c0_i32_0 : i32, i32
  }
  func.func @transform_1(%arg0: i32) -> (i32, i32) {
    %c0_i32 = arith.constant 0 : i32
    %c0_i32_0 = arith.constant 0 : i32
    %c0_i32_1 = arith.constant 0 : i32
    return %c0_i32, %c0_i32_0 : i32, i32
  }
  func.func @transform_2(%arg0: i32) -> (i32, i32) {
    %c0_i32 = arith.constant 0 : i32
    %c0_i32_0 = arith.constant 0 : i32
    %c0_i32_1 = arith.constant 0 : i32
    return %c0_i32, %c0_i32_0 : i32, i32
  }
  func.func @transform_3(%arg0: i32) -> (i32, i32) {
    %c0_i32 = arith.constant 0 : i32
    %c0_i32_0 = arith.constant 0 : i32
    %c0_i32_1 = arith.constant 0 : i32
    return %c0_i32, %c0_i32_0 : i32, i32
  }
  func.func @transform_4(%arg0: i32) -> (i32, i32) {
    %c0_i32 = arith.constant 0 : i32
    %c0_i32_0 = arith.constant 0 : i32
    %c0_i32_1 = arith.constant 0 : i32
    return %c0_i32, %c0_i32_0 : i32, i32
  }
  func.func @transform_5(%arg0: i32) -> (i32, i32) {
    %c0_i32 = arith.constant 0 : i32
    %c0_i32_0 = arith.constant 0 : i32
    %c0_i32_1 = arith.constant 0 : i32
    return %c0_i32, %c0_i32_0 : i32, i32
  }
  func.func @transform_6(%arg0: i32) -> (i32, i32) {
    %c0_i32 = arith.constant 0 : i32
    %c0_i32_0 = arith.constant 0 : i32
    %c0_i32_1 = arith.constant 0 : i32
    return %c0_i32, %c0_i32_0 : i32, i32
  }
  func.func @transform_7(%arg0: i32) -> (i32, i32) {
    %c0_i32 = arith.constant 0 : i32
    %c0_i32_0 = arith.constant 0 : i32
    %c0_i32_1 = arith.constant 0 : i32
    return %c0_i32, %c0_i32_0 : i32, i32
  }
  func.func @transform_8(%arg0: i32) -> (i32, i32) {
    %c0_i32 = arith.constant 0 : i32
    %c0_i32_0 = arith.constant 0 : i32
    %c0_i32_1 = arith.constant 0 : i32
    return %c0_i32, %c0_i32_0 : i32, i32
  }
  func.func @transform_9(%arg0: i32) -> (i32, i32) {
    %c0_i32 = arith.constant 0 : i32
    %c0_i32_0 = arith.constant 0 : i32
    %c0_i32_1 = arith.constant 0 : i32
    return %c0_i32, %c0_i32_0 : i32, i32
  }
  func.func @transform_10(%arg0: i32) -> (i32, i32) {
    %c0_i32 = arith.constant 0 : i32
    %c0_i32_0 = arith.constant 0 : i32
    %c0_i32_1 = arith.constant 0 : i32
    return %c0_i32, %c0_i32_0 : i32, i32
  }
  func.func @transform_11(%arg0: i32) -> (i32, i32) {
    %c0_i32 = arith.constant 0 : i32
    %c0_i32_0 = arith.constant 0 : i32
    %c0_i32_1 = arith.constant 0 : i32
    return %c0_i32, %c0_i32_0 : i32, i32
  }
  func.func @transform_12(%arg0: i32) -> (i32, i32) {
    %c0_i32 = arith.constant 0 : i32
    %c0_i32_0 = arith.constant 0 : i32
    %c0_i32_1 = arith.constant 0 : i32
    return %c0_i32, %c0_i32_0 : i32, i32
  }
  func.func @transform_13(%arg0: i32) -> (i32, i32) {
    %c0_i32 = arith.constant 0 : i32
    %c0_i32_0 = arith.constant 0 : i32
    %c0_i32_1 = arith.constant 0 : i32
    return %c0_i32, %c0_i32_0 : i32, i32
  }
  func.func @transform_14(%arg0: i32) -> (i32, i32) {
    %c0_i32 = arith.constant 0 : i32
    %c0_i32_0 = arith.constant 0 : i32
    %c0_i32_1 = arith.constant 0 : i32
    return %c0_i32, %c0_i32_0 : i32, i32
  }
  func.func @transform_15(%arg0: i32) -> (i32, i32) {
    %c0_i32 = arith.constant 0 : i32
    %c0_i32_0 = arith.constant 0 : i32
    %c0_i32_1 = arith.constant 0 : i32
    return %c0_i32, %c0_i32_0 : i32, i32
  }
  func.func @transform_16(%arg0: i32) -> (i32, i32) {
    %c0_i32 = arith.constant 0 : i32
    %c0_i32_0 = arith.constant 0 : i32
    %c0_i32_1 = arith.constant 0 : i32
    return %c0_i32, %c0_i32_0 : i32, i32
  }
  func.func @transform_17(%arg0: i32) -> (i32, i32) {
    %c0_i32 = arith.constant 0 : i32
    %c0_i32_0 = arith.constant 0 : i32
    %c0_i32_1 = arith.constant 0 : i32
    return %c0_i32, %c0_i32_0 : i32, i32
  }
  func.func @transform_18(%arg0: i32) -> (i32, i32) {
    %c0_i32 = arith.constant 0 : i32
    %c0_i32_0 = arith.constant 0 : i32
    %c0_i32_1 = arith.constant 0 : i32
    return %c0_i32, %c0_i32_0 : i32, i32
  }
  func.func @transform_19(%arg0: i32) -> (i32, i32) {
    %c0_i32 = arith.constant 0 : i32
    %c0_i32_0 = arith.constant 0 : i32
    %c0_i32_1 = arith.constant 0 : i32
    return %c0_i32, %c0_i32_0 : i32, i32
  }
  func.func @transform_20(%arg0: i32) -> (i32, i32) {
    %c0_i32 = arith.constant 0 : i32
    %c0_i32_0 = arith.constant 0 : i32
    %c0_i32_1 = arith.constant 0 : i32
    return %c0_i32, %c0_i32_0 : i32, i32
  }
  func.func @transform_21(%arg0: i32) -> (i32, i32) {
    %c0_i32 = arith.constant 0 : i32
    %c0_i32_0 = arith.constant 0 : i32
    %c0_i32_1 = arith.constant 0 : i32
    return %c0_i32, %c0_i32_0 : i32, i32
  }
  func.func @transform_22(%arg0: i32) -> (i32, i32) {
    %c0_i32 = arith.constant 0 : i32
    %c0_i32_0 = arith.constant 0 : i32
    %c0_i32_1 = arith.constant 0 : i32
    return %c0_i32, %c0_i32_0 : i32, i32
  }
  func.func @transform_23(%arg0: i32) -> (i32, i32) {
    %c0_i32 = arith.constant 0 : i32
    %c0_i32_0 = arith.constant 0 : i32
    %c0_i32_1 = arith.constant 0 : i32
    return %c0_i32, %c0_i32_0 : i32, i32
  }
  func.func @transform_24(%arg0: i32) -> (i32, i32, i32) {
    %c0_i32 = arith.constant 0 : i32
    %c0_i32_0 = arith.constant 0 : i32
    %c0_i32_1 = arith.constant 0 : i32
    return %arg0, %c0_i32, %c0_i32_0 : i32, i32, i32
  }
}

</mosaic_0001>

<llo_original>
// kernel: bilat_tcn_forward.1
$region0: #{bilat_tcn_forward.1}
  #allocation0 [shape = 'u32[]', space=smem, size = 0x4, offset = 0x4, fixed_abs, tag = 'smem constant byte address 0x4 - core index']
  #allocation1 [shape = 'u32[144,128]{1,0:T(1,128)}', space=vmem, size = 0x12000, scoped, tag = 'internal scratch']
  %s0 = inlined_call_operand.vmem [shape: f32[8,34], index: 0, kind: input, shape index: {}]
  %s1 = inlined_call_operand.vmem [shape: f32[8,34], index: 1, kind: input, shape index: {}]
  %s2 = inlined_call_operand.vmem [shape: bf16[8,24], index: 2, kind: input, shape index: {}]
  %s3 = inlined_call_operand.vmem [shape: f32[8,1], index: 3, kind: input, shape index: {}]
  %s4 = inlined_call_operand.vmem [shape: bf16[8,24], index: 4, kind: input, shape index: {}]
  %s5 = inlined_call_operand.vmem [shape: f32[8,1], index: 5, kind: input, shape index: {}]
  %s6 = inlined_call_operand.vmem [shape: bf16[8,8], index: 6, kind: input, shape index: {}]
  %s7 = inlined_call_operand.vmem [shape: f32[8,1], index: 7, kind: input, shape index: {}]
  %s8 = inlined_call_operand.vmem [shape: bf16[8,24], index: 8, kind: input, shape index: {}]
  %s9 = inlined_call_operand.vmem [shape: f32[8,1], index: 9, kind: input, shape index: {}]
  %s10 = inlined_call_operand.vmem [shape: bf16[8,24], index: 10, kind: input, shape index: {}]
  %s11 = inlined_call_operand.vmem [shape: f32[8,1], index: 11, kind: input, shape index: {}]
  %s12 = inlined_call_operand.vmem [shape: bf16[8,24], index: 12, kind: input, shape index: {}]
  %s13 = inlined_call_operand.vmem [shape: f32[8,1], index: 13, kind: input, shape index: {}]
  %s14 = inlined_call_operand.vmem [shape: bf16[8,24], index: 14, kind: input, shape index: {}]
  %s15 = inlined_call_operand.vmem [shape: f32[8,1], index: 15, kind: input, shape index: {}]
  %s16 = inlined_call_operand.vmem [shape: bf16[8,8], index: 16, kind: input, shape index: {}]
  %s17 = inlined_call_operand.vmem [shape: f32[8,1], index: 17, kind: input, shape index: {}]
  %s18 = inlined_call_operand.vmem [shape: bf16[8,24], index: 18, kind: input, shape index: {}]
  %s19 = inlined_call_operand.vmem [shape: f32[8,1], index: 19, kind: input, shape index: {}]
  %s20 = inlined_call_operand.vmem [shape: bf16[8,24], index: 20, kind: input, shape index: {}]
  %s21 = inlined_call_operand.vmem [shape: f32[8,1], index: 21, kind: input, shape index: {}]
  %s22 = inlined_call_operand.vmem [shape: bf16[8,8], index: 22, kind: input, shape index: {}]
  %s23 = inlined_call_operand.vmem [shape: bf16[8,8], index: 23, kind: input, shape index: {}]
  %s24 = inlined_call_operand.vmem [shape: f32[2,8,2], index: 24, kind: output, shape index: {}]
  %s25 = sld [smem:[#allocation0]]
  $region137: #{bilat_tcn_forward.1} parent=0
    _
  %s27 = ssub.s32 1, %s25
  %s28 = scalar_select 0, %s27, %s25
  loop: start=0, step=1, limit=4
  $region2: #{bilat_tcn_forward.1} parent=0 // loop_pre_header
    _
  $region3: #{bilat_tcn_forward.1} parent=0 // loop_header
    %s30 = sphi 0, %s34
    %p31 = scmp.ge.s32.totalorder %s30, 4
    %s38 = sphi 0, %s38
    %s40 = sphi 0, %s38
    %s41 = sphi 0, %s40
    %s55 = sphi 0, %s41
    %s59 = sphi 0, %s59
    %s61 = sphi 0, %s59
    %s62 = sphi 0, %s61
    %s76 = sphi 0, %s62
    %s80 = sphi 0, %s80
    %s82 = sphi 0, %s80
    %s83 = sphi 0, %s82
    %s97 = sphi 0, %s83
    %s101 = sphi 0, %s101
    %s103 = sphi 0, %s101
    %s104 = sphi 0, %s103
    %s118 = sphi 0, %s104
    %s122 = sphi 0, %s122
    %s124 = sphi 0, %s122
    %s125 = sphi 0, %s124
    %s139 = sphi 0, %s125
    %s143 = sphi 0, %s143
    %s145 = sphi 0, %s143
    %s146 = sphi 0, %s145
    %s160 = sphi 0, %s146
    %s164 = sphi 0, %s164
    %s166 = sphi 0, %s164
    %s167 = sphi 0, %s166
    %s181 = sphi 0, %s167
    %s185 = sphi 0, %s185
    %s187 = sphi 0, %s185
    %s188 = sphi 0, %s187
    %s202 = sphi 0, %s188
    %s206 = sphi 0, %s206
    %s208 = sphi 0, %s206
    %s209 = sphi 0, %s208
    %s223 = sphi 0, %s209
    %s227 = sphi 0, %s227
    %s229 = sphi 0, %s227
    %s230 = sphi 0, %s229
    %s244 = sphi 0, %s230
    %s248 = sphi 0, %s248
    %s250 = sphi 0, %s248
    %s251 = sphi 0, %s250
    %s265 = sphi 0, %s251
    %s269 = sphi 0, %s269
    %s271 = sphi 0, %s269
    %s272 = sphi 0, %s271
    %s286 = sphi 0, %s272
    %s290 = sphi 0, %s290
    %s292 = sphi 0, %s290
    %s293 = sphi 0, %s292
    %s307 = sphi 0, %s293
    %s311 = sphi 0, %s311
    %s313 = sphi 0, %s311
    %s314 = sphi 0, %s313
    %s328 = sphi 0, %s314
    %s332 = sphi 0, %s332
    %s334 = sphi 0, %s332
    %s335 = sphi 0, %s334
    %s349 = sphi 0, %s335
    %s353 = sphi 0, %s353
    %s355 = sphi 0, %s353
    %s356 = sphi 0, %s355
    %s370 = sphi 0, %s356
    %s374 = sphi 0, %s374
    %s376 = sphi 0, %s374
    %s377 = sphi 0, %s376
    %s391 = sphi 0, %s377
    %s395 = sphi 0, %s395
    %s397 = sphi 0, %s395
    %s398 = sphi 0, %s397
    %s412 = sphi 0, %s398
    %s416 = sphi 0, %s416
    %s418 = sphi 0, %s416
    %s419 = sphi 0, %s418
    %s433 = sphi 0, %s419
    %s437 = sphi 0, %s437
    %s439 = sphi 0, %s437
    %s440 = sphi 0, %s439
    %s454 = sphi 0, %s440
    %s458 = sphi 0, %s458
    %s460 = sphi 0, %s458
    %s461 = sphi 0, %s460
    %s475 = sphi 0, %s461
    %s479 = sphi 0, %s479
    %s481 = sphi 0, %s479
    %s482 = sphi 0, %s481
    %s496 = sphi 0, %s482
    %s500 = sphi 0, %s500
    %s502 = sphi 0, %s500
    %s503 = sphi 0, %s502
    %s517 = sphi 0, %s503
    %s521 = sphi 0, %s521
    %s523 = sphi 0, %s521
    %s524 = sphi 0, %s523
    %s538 = sphi 0, %s524
    %s544 = sphi 0, %s546
    %s547 = sphi 0, %s544
    %s548 = sphi 0, %s547
    %s564 = sphi 0, %s548
  $region4: #{bilat_tcn_forward.1} parent=0 // loop_header_branch
    %33 = sbr.rel (%p31) target = $region8
  $region5: #{bilat_tcn_forward.1} parent=0 // loop_body
    %s35 = ssub.s32 %s30, 1
    %s36 = ssub.s32 %s30, 2
    %s37 = sadd.s32 %s30, 1
    %s39 = sadd.s32 %s38, 1
    %p42 = scmp.eq.s32.totalorder %s30, 1
    %p43 = scmp.ne.s32.totalorder %s38, %s40
    %p44 = scmp.eq.s32.totalorder %s30, 0
    %p45 = por %p43, %p44
    %p46 = scmp.ne.s32.totalorder %s38, %s40
    %p47 = scmp.eq.s32.totalorder %s35, 1
    %p48 = por %p46, %p47
    %p49 = scmp.ne.s32.totalorder %s40, %s41
    %p50 = scmp.eq.s32.totalorder %s35, 0
    %p51 = por %p49, %p50
    %p52 = scmp.ne.s32.totalorder %s40, %s41
    %p53 = scmp.eq.s32.totalorder %s36, 1
    %p54 = por %p52, %p53
    %p56 = scmp.ne.s32.totalorder %s41, %s55
    %p57 = scmp.eq.s32.totalorder %s36, 0
    %p58 = por %p56, %p57
    %s60 = sadd.s32 %s59, 1
    %p63 = scmp.eq.s32.totalorder %s30, 1
    %p64 = scmp.ne.s32.totalorder %s59, %s61
    %p65 = scmp.eq.s32.totalorder %s30, 0
    %p66 = por %p64, %p65
    %p67 = scmp.ne.s32.totalorder %s59, %s61
    %p68 = scmp.eq.s32.totalorder %s35, 1
    %p69 = por %p67, %p68
    %p70 = scmp.ne.s32.totalorder %s61, %s62
    %p71 = scmp.eq.s32.totalorder %s35, 0
    %p72 = por %p70, %p71
    %p73 = scmp.ne.s32.totalorder %s61, %s62
    %p74 = scmp.eq.s32.totalorder %s36, 1
    %p75 = por %p73, %p74
    %p77 = scmp.ne.s32.totalorder %s62, %s76
    %p78 = scmp.eq.s32.totalorder %s36, 0
    %p79 = por %p77, %p78
    %s81 = sadd.s32 %s80, 1
    %p84 = scmp.eq.s32.totalorder %s30, 1
    %p85 = scmp.ne.s32.totalorder %s80, %s82
    %p86 = scmp.eq.s32.totalorder %s30, 0
    %p87 = por %p85, %p86
    %p88 = scmp.ne.s32.totalorder %s80, %s82
    %p89 = scmp.eq.s32.totalorder %s35, 1
    %p90 = por %p88, %p89
    %p91 = scmp.ne.s32.totalorder %s82, %s83
    %p92 = scmp.eq.s32.totalorder %s35, 0
    %p93 = por %p91, %p92
    %p94 = scmp.ne.s32.totalorder %s82, %s83
    %p95 = scmp.eq.s32.totalorder %s36, 1
    %p96 = por %p94, %p95
    %p98 = scmp.ne.s32.totalorder %s83, %s97
    %p99 = scmp.eq.s32.totalorder %s36, 0
    %p100 = por %p98, %p99
    %s102 = sadd.s32 %s101, 1
    %p105 = scmp.eq.s32.totalorder %s30, 1
    %p106 = scmp.ne.s32.totalorder %s101, %s103
    %p107 = scmp.eq.s32.totalorder %s30, 0
    %p108 = por %p106, %p107
    %p109 = scmp.ne.s32.totalorder %s101, %s103
    %p110 = scmp.eq.s32.totalorder %s35, 1
    %p111 = por %p109, %p110
    %p112 = scmp.ne.s32.totalorder %s103, %s104
    %p113 = scmp.eq.s32.totalorder %s35, 0
    %p114 = por %p112, %p113
    %p115 = scmp.ne.s32.totalorder %s103, %s104
    %p116 = scmp.eq.s32.totalorder %s36, 1
    %p117 = por %p115, %p116
    %p119 = scmp.ne.s32.totalorder %s104, %s118
    %p120 = scmp.eq.s32.totalorder %s36, 0
    %p121 = por %p119, %p120
    %s123 = sadd.s32 %s122, 1
    %p126 = scmp.eq.s32.totalorder %s30, 1
    %p127 = scmp.ne.s32.totalorder %s122, %s124
    %p128 = scmp.eq.s32.totalorder %s30, 0
    %p129 = por %p127, %p128
    %p130 = scmp.ne.s32.totalorder %s122, %s124
    %p131 = scmp.eq.s32.totalorder %s35, 1
    %p132 = por %p130, %p131
    %p133 = scmp.ne.s32.totalorder %s124, %s125
    %p134 = scmp.eq.s32.totalorder %s35, 0
    %p135 = por %p133, %p134
    %p136 = scmp.ne.s32.totalorder %s124, %s125
    %p137 = scmp.eq.s32.totalorder %s36, 1
    %p138 = por %p136, %p137
    %p140 = scmp.ne.s32.totalorder %s125, %s139
    %p141 = scmp.eq.s32.totalorder %s36, 0
    %p142 = por %p140, %p141
    %s144 = sadd.s32 %s143, 1
    %p147 = scmp.eq.s32.totalorder %s30, 1
    %p148 = scmp.ne.s32.totalorder %s143, %s145
    %p149 = scmp.eq.s32.totalorder %s30, 0
    %p150 = por %p148, %p149
    %p151 = scmp.ne.s32.totalorder %s143, %s145
    %p152 = scmp.eq.s32.totalorder %s35, 1
    %p153 = por %p151, %p152
    %p154 = scmp.ne.s32.totalorder %s145, %s146
    %p155 = scmp.eq.s32.totalorder %s35, 0
    %p156 = por %p154, %p155
    %p157 = scmp.ne.s32.totalorder %s145, %s146
    %p158 = scmp.eq.s32.totalorder %s36, 1
    %p159 = por %p157, %p158
    %p161 = scmp.ne.s32.totalorder %s146, %s160
    %p162 = scmp.eq.s32.totalorder %s36, 0
    %p163 = por %p161, %p162
    %s165 = sadd.s32 %s164, 1
    %p168 = scmp.eq.s32.totalorder %s30, 1
    %p169 = scmp.ne.s32.totalorder %s164, %s166
    %p170 = scmp.eq.s32.totalorder %s30, 0
    %p171 = por %p169, %p170
    %p172 = scmp.ne.s32.totalorder %s164, %s166
    %p173 = scmp.eq.s32.totalorder %s35, 1
    %p174 = por %p172, %p173
    %p175 = scmp.ne.s32.totalorder %s166, %s167
    %p176 = scmp.eq.s32.totalorder %s35, 0
    %p177 = por %p175, %p176
    %p178 = scmp.ne.s32.totalorder %s166, %s167
    %p179 = scmp.eq.s32.totalorder %s36, 1
    %p180 = por %p178, %p179
    %p182 = scmp.ne.s32.totalorder %s167, %s181
    %p183 = scmp.eq.s32.totalorder %s36, 0
    %p184 = por %p182, %p183
    %s186 = sadd.s32 %s185, 1
    %p189 = scmp.eq.s32.totalorder %s30, 1
    %p190 = scmp.ne.s32.totalorder %s185, %s187
    %p191 = scmp.eq.s32.totalorder %s30, 0
    %p192 = por %p190, %p191
    %p193 = scmp.ne.s32.totalorder %s185, %s187
    %p194 = scmp.eq.s32.totalorder %s35, 1
    %p195 = por %p193, %p194
    %p196 = scmp.ne.s32.totalorder %s187, %s188
    %p197 = scmp.eq.s32.totalorder %s35, 0
    %p198 = por %p196, %p197
    %p199 = scmp.ne.s32.totalorder %s187, %s188
    %p200 = scmp.eq.s32.totalorder %s36, 1
    %p201 = por %p199, %p200
    %p203 = scmp.ne.s32.totalorder %s188, %s202
    %p204 = scmp.eq.s32.totalorder %s36, 0
    %p205 = por %p203, %p204
    %s207 = sadd.s32 %s206, 1
    %p210 = scmp.eq.s32.totalorder %s30, 1
    %p211 = scmp.ne.s32.totalorder %s206, %s208
    %p212 = scmp.eq.s32.totalorder %s30, 0
    %p213 = por %p211, %p212
    %p214 = scmp.ne.s32.totalorder %s206, %s208
    %p215 = scmp.eq.s32.totalorder %s35, 1
    %p216 = por %p214, %p215
    %p217 = scmp.ne.s32.totalorder %s208, %s209
    %p218 = scmp.eq.s32.totalorder %s35, 0
    %p219 = por %p217, %p218
    %p220 = scmp.ne.s32.totalorder %s208, %s209
    %p221 = scmp.eq.s32.totalorder %s36, 1
    %p222 = por %p220, %p221
    %p224 = scmp.ne.s32.totalorder %s209, %s223
    %p225 = scmp.eq.s32.totalorder %s36, 0
    %p226 = por %p224, %p225
    %s228 = sadd.s32 %s227, 1
    %p231 = scmp.eq.s32.totalorder %s30, 1
    %p232 = scmp.ne.s32.totalorder %s227, %s229
    %p233 = scmp.eq.s32.totalorder %s30, 0
    %p234 = por %p232, %p233
    %p235 = scmp.ne.s32.totalorder %s227, %s229
    %p236 = scmp.eq.s32.totalorder %s35, 1
    %p237 = por %p235, %p236
    %p238 = scmp.ne.s32.totalorder %s229, %s230
    %p239 = scmp.eq.s32.totalorder %s35, 0
    %p240 = por %p238, %p239
    %p241 = scmp.ne.s32.totalorder %s229, %s230
    %p242 = scmp.eq.s32.totalorder %s36, 1
    %p243 = por %p241, %p242
    %p245 = scmp.ne.s32.totalorder %s230, %s244
    %p246 = scmp.eq.s32.totalorder %s36, 0
    %p247 = por %p245, %p246
    %s249 = sadd.s32 %s248, 1
    %p252 = scmp.eq.s32.totalorder %s30, 1
    %p253 = scmp.ne.s32.totalorder %s248, %s250
    %p254 = scmp.eq.s32.totalorder %s30, 0
    %p255 = por %p253, %p254
    %p256 = scmp.ne.s32.totalorder %s248, %s250
    %p257 = scmp.eq.s32.totalorder %s35, 1
    %p258 = por %p256, %p257
    %p259 = scmp.ne.s32.totalorder %s250, %s251
    %p260 = scmp.eq.s32.totalorder %s35, 0
    %p261 = por %p259, %p260
    %p262 = scmp.ne.s32.totalorder %s250, %s251
    %p263 = scmp.eq.s32.totalorder %s36, 1
    %p264 = por %p262, %p263
    %p266 = scmp.ne.s32.totalorder %s251, %s265
    %p267 = scmp.eq.s32.totalorder %s36, 0
    %p268 = por %p266, %p267
    %s270 = sadd.s32 %s269, 1
    %p273 = scmp.eq.s32.totalorder %s30, 1
    %p274 = scmp.ne.s32.totalorder %s269, %s271
    %p275 = scmp.eq.s32.totalorder %s30, 0
    %p276 = por %p274, %p275
    %p277 = scmp.ne.s32.totalorder %s269, %s271
    %p278 = scmp.eq.s32.totalorder %s35, 1
    %p279 = por %p277, %p278
    %p280 = scmp.ne.s32.totalorder %s271, %s272
    %p281 = scmp.eq.s32.totalorder %s35, 0
    %p282 = por %p280, %p281
    %p283 = scmp.ne.s32.totalorder %s271, %s272
    %p284 = scmp.eq.s32.totalorder %s36, 1
    %p285 = por %p283, %p284
    %p287 = scmp.ne.s32.totalorder %s272, %s286
    %p288 = scmp.eq.s32.totalorder %s36, 0
    %p289 = por %p287, %p288
    %s291 = sadd.s32 %s290, 1
    %p294 = scmp.eq.s32.totalorder %s30, 1
    %p295 = scmp.ne.s32.totalorder %s290, %s292
    %p296 = scmp.eq.s32.totalorder %s30, 0
    %p297 = por %p295, %p296
    %p298 = scmp.ne.s32.totalorder %s290, %s292
    %p299 = scmp.eq.s32.totalorder %s35, 1
    %p300 = por %p298, %p299
    %p301 = scmp.ne.s32.totalorder %s292, %s293
    %p302 = scmp.eq.s32.totalorder %s35, 0
    %p303 = por %p301, %p302
    %p304 = scmp.ne.s32.totalorder %s292, %s293
    %p305 = scmp.eq.s32.totalorder %s36, 1
    %p306 = por %p304, %p305
    %p308 = scmp.ne.s32.totalorder %s293, %s307
    %p309 = scmp.eq.s32.totalorder %s36, 0
    %p310 = por %p308, %p309
    %s312 = sadd.s32 %s311, 1
    %p315 = scmp.eq.s32.totalorder %s30, 1
    %p316 = scmp.ne.s32.totalorder %s311, %s313
    %p317 = scmp.eq.s32.totalorder %s30, 0
    %p318 = por %p316, %p317
    %p319 = scmp.ne.s32.totalorder %s311, %s313
    %p320 = scmp.eq.s32.totalorder %s35, 1
    %p321 = por %p319, %p320
    %p322 = scmp.ne.s32.totalorder %s313, %s314
    %p323 = scmp.eq.s32.totalorder %s35, 0
    %p324 = por %p322, %p323
    %p325 = scmp.ne.s32.totalorder %s313, %s314
    %p326 = scmp.eq.s32.totalorder %s36, 1
    %p327 = por %p325, %p326
    %p329 = scmp.ne.s32.totalorder %s314, %s328
    %p330 = scmp.eq.s32.totalorder %s36, 0
    %p331 = por %p329, %p330
    %s333 = sadd.s32 %s332, 1
    %p336 = scmp.eq.s32.totalorder %s30, 1
    %p337 = scmp.ne.s32.totalorder %s332, %s334
    %p338 = scmp.eq.s32.totalorder %s30, 0
    %p339 = por %p337, %p338
    %p340 = scmp.ne.s32.totalorder %s332, %s334
    %p341 = scmp.eq.s32.totalorder %s35, 1
    %p342 = por %p340, %p341
    %p343 = scmp.ne.s32.totalorder %s334, %s335
    %p344 = scmp.eq.s32.totalorder %s35, 0
    %p345 = por %p343, %p344
    %p346 = scmp.ne.s32.totalorder %s334, %s335
    %p347 = scmp.eq.s32.totalorder %s36, 1
    %p348 = por %p346, %p347
    %p350 = scmp.ne.s32.totalorder %s335, %s349
    %p351 = scmp.eq.s32.totalorder %s36, 0
    %p352 = por %p350, %p351
    %s354 = sadd.s32 %s353, 1
    %p357 = scmp.eq.s32.totalorder %s30, 1
    %p358 = scmp.ne.s32.totalorder %s353, %s355
    %p359 = scmp.eq.s32.totalorder %s30, 0
    %p360 = por %p358, %p359
    %p361 = scmp.ne.s32.totalorder %s353, %s355
    %p362 = scmp.eq.s32.totalorder %s35, 1
    %p363 = por %p361, %p362
    %p364 = scmp.ne.s32.totalorder %s355, %s356
    %p365 = scmp.eq.s32.totalorder %s35, 0
    %p366 = por %p364, %p365
    %p367 = scmp.ne.s32.totalorder %s355, %s356
    %p368 = scmp.eq.s32.totalorder %s36, 1
    %p369 = por %p367, %p368
    %p371 = scmp.ne.s32.totalorder %s356, %s370
    %p372 = scmp.eq.s32.totalorder %s36, 0
    %p373 = por %p371, %p372
    %s375 = sadd.s32 %s374, 1
    %p378 = scmp.eq.s32.totalorder %s30, 1
    %p379 = scmp.ne.s32.totalorder %s374, %s376
    %p380 = scmp.eq.s32.totalorder %s30, 0
    %p381 = por %p379, %p380
    %p382 = scmp.ne.s32.totalorder %s374, %s376
    %p383 = scmp.eq.s32.totalorder %s35, 1
    %p384 = por %p382, %p383
    %p385 = scmp.ne.s32.totalorder %s376, %s377
    %p386 = scmp.eq.s32.totalorder %s35, 0
    %p387 = por %p385, %p386
    %p388 = scmp.ne.s32.totalorder %s376, %s377
    %p389 = scmp.eq.s32.totalorder %s36, 1
    %p390 = por %p388, %p389
    %p392 = scmp.ne.s32.totalorder %s377, %s391
    %p393 = scmp.eq.s32.totalorder %s36, 0
    %p394 = por %p392, %p393
    %s396 = sadd.s32 %s395, 1
    %p399 = scmp.eq.s32.totalorder %s30, 1
    %p400 = scmp.ne.s32.totalorder %s395, %s397
    %p401 = scmp.eq.s32.totalorder %s30, 0
    %p402 = por %p400, %p401
    %p403 = scmp.ne.s32.totalorder %s395, %s397
    %p404 = scmp.eq.s32.totalorder %s35, 1
    %p405 = por %p403, %p404
    %p406 = scmp.ne.s32.totalorder %s397, %s398
    %p407 = scmp.eq.s32.totalorder %s35, 0
    %p408 = por %p406, %p407
    %p409 = scmp.ne.s32.totalorder %s397, %s398
    %p410 = scmp.eq.s32.totalorder %s36, 1
    %p411 = por %p409, %p410
    %p413 = scmp.ne.s32.totalorder %s398, %s412
    %p414 = scmp.eq.s32.totalorder %s36, 0
    %p415 = por %p413, %p414
    %s417 = sadd.s32 %s416, 1
    %p420 = scmp.eq.s32.totalorder %s30, 1
    %p421 = scmp.ne.s32.totalorder %s416, %s418
    %p422 = scmp.eq.s32.totalorder %s30, 0
    %p423 = por %p421, %p422
    %p424 = scmp.ne.s32.totalorder %s416, %s418
    %p425 = scmp.eq.s32.totalorder %s35, 1
    %p426 = por %p424, %p425
    %p427 = scmp.ne.s32.totalorder %s418, %s419
    %p428 = scmp.eq.s32.totalorder %s35, 0
    %p429 = por %p427, %p428
    %p430 = scmp.ne.s32.totalorder %s418, %s419
    %p431 = scmp.eq.s32.totalorder %s36, 1
    %p432 = por %p430, %p431
    %p434 = scmp.ne.s32.totalorder %s419, %s433
    %p435 = scmp.eq.s32.totalorder %s36, 0
    %p436 = por %p434, %p435
    %s438 = sadd.s32 %s437, 1
    %p441 = scmp.eq.s32.totalorder %s30, 1
    %p442 = scmp.ne.s32.totalorder %s437, %s439
    %p443 = scmp.eq.s32.totalorder %s30, 0
    %p444 = por %p442, %p443
    %p445 = scmp.ne.s32.totalorder %s437, %s439
    %p446 = scmp.eq.s32.totalorder %s35, 1
    %p447 = por %p445, %p446
    %p448 = scmp.ne.s32.totalorder %s439, %s440
    %p449 = scmp.eq.s32.totalorder %s35, 0
    %p450 = por %p448, %p449
    %p451 = scmp.ne.s32.totalorder %s439, %s440
    %p452 = scmp.eq.s32.totalorder %s36, 1
    %p453 = por %p451, %p452
    %p455 = scmp.ne.s32.totalorder %s440, %s454
    %p456 = scmp.eq.s32.totalorder %s36, 0
    %p457 = por %p455, %p456
    %s459 = sadd.s32 %s458, 1
    %p462 = scmp.eq.s32.totalorder %s30, 1
    %p463 = scmp.ne.s32.totalorder %s458, %s460
    %p464 = scmp.eq.s32.totalorder %s30, 0
    %p465 = por %p463, %p464
    %p466 = scmp.ne.s32.totalorder %s458, %s460
    %p467 = scmp.eq.s32.totalorder %s35, 1
    %p468 = por %p466, %p467
    %p469 = scmp.ne.s32.totalorder %s460, %s461
    %p470 = scmp.eq.s32.totalorder %s35, 0
    %p471 = por %p469, %p470
    %p472 = scmp.ne.s32.totalorder %s460, %s461
    %p473 = scmp.eq.s32.totalorder %s36, 1
    %p474 = por %p472, %p473
    %p476 = scmp.ne.s32.totalorder %s461, %s475
    %p477 = scmp.eq.s32.totalorder %s36, 0
    %p478 = por %p476, %p477
    %s480 = sadd.s32 %s479, 1
    %p483 = scmp.eq.s32.totalorder %s30, 1
    %p484 = scmp.ne.s32.totalorder %s479, %s481
    %p485 = scmp.eq.s32.totalorder %s30, 0
    %p486 = por %p484, %p485
    %p487 = scmp.ne.s32.totalorder %s479, %s481
    %p488 = scmp.eq.s32.totalorder %s35, 1
    %p489 = por %p487, %p488
    %p490 = scmp.ne.s32.totalorder %s481, %s482
    %p491 = scmp.eq.s32.totalorder %s35, 0
    %p492 = por %p490, %p491
    %p493 = scmp.ne.s32.totalorder %s481, %s482
    %p494 = scmp.eq.s32.totalorder %s36, 1
    %p495 = por %p493, %p494
    %p497 = scmp.ne.s32.totalorder %s482, %s496
    %p498 = scmp.eq.s32.totalorder %s36, 0
    %p499 = por %p497, %p498
    %s501 = sadd.s32 %s500, 1
    %p504 = scmp.eq.s32.totalorder %s30, 1
    %p505 = scmp.ne.s32.totalorder %s500, %s502
    %p506 = scmp.eq.s32.totalorder %s30, 0
    %p507 = por %p505, %p506
    %p508 = scmp.ne.s32.totalorder %s500, %s502
    %p509 = scmp.eq.s32.totalorder %s35, 1
    %p510 = por %p508, %p509
    %p511 = scmp.ne.s32.totalorder %s502, %s503
    %p512 = scmp.eq.s32.totalorder %s35, 0
    %p513 = por %p511, %p512
    %p514 = scmp.ne.s32.totalorder %s502, %s503
    %p515 = scmp.eq.s32.totalorder %s36, 1
    %p516 = por %p514, %p515
    %p518 = scmp.ne.s32.totalorder %s503, %s517
    %p519 = scmp.eq.s32.totalorder %s36, 0
    %p520 = por %p518, %p519
    %s522 = sadd.s32 %s521, 1
    %p525 = scmp.eq.s32.totalorder %s30, 1
    %p526 = scmp.ne.s32.totalorder %s521, %s523
    %p527 = scmp.eq.s32.totalorder %s30, 0
    %p528 = por %p526, %p527
    %p529 = scmp.ne.s32.totalorder %s521, %s523
    %p530 = scmp.eq.s32.totalorder %s35, 1
    %p531 = por %p529, %p530
    %p532 = scmp.ne.s32.totalorder %s523, %s524
    %p533 = scmp.eq.s32.totalorder %s35, 0
    %p534 = por %p532, %p533
    %p535 = scmp.ne.s32.totalorder %s523, %s524
    %p536 = scmp.eq.s32.totalorder %s36, 1
    %p537 = por %p535, %p536
    %p539 = scmp.ne.s32.totalorder %s524, %s538
    %p540 = scmp.eq.s32.totalorder %s36, 0
    %p541 = por %p539, %p540
    %s542 = ssub.s32 %s30, %s37
    %p543 = scmp.eq.s32.totalorder %s542, 0
    %s545 = sadd.s32 %s544, 1
    %s546 = scalar_select %p543, %s544, %s545
    %p549 = pneg %p543
    %p550 = scmp.eq.s32.totalorder %s30, 1
    %p551 = por %p549, %p550
    %p552 = scmp.ne.s32.totalorder %s544, %s547
    %p553 = scmp.eq.s32.totalorder %s30, 0
    %p554 = por %p552, %p553
    %p555 = scmp.ne.s32.totalorder %s544, %s547
    %p556 = scmp.eq.s32.totalorder %s35, 1
    %p557 = por %p555, %p556
    %p558 = scmp.ne.s32.totalorder %s547, %s548
    %p559 = scmp.eq.s32.totalorder %s35, 0
    %p560 = por %p558, %p559
    %p561 = scmp.ne.s32.totalorder %s547, %s548
    %p562 = scmp.eq.s32.totalorder %s36, 1
    %p563 = por %p561, %p562
    %p565 = scmp.ne.s32.totalorder %s548, %s564
    %p566 = scmp.eq.s32.totalorder %s36, 0
    %p567 = por %p565, %p566
    %p568 = scmp.le.s32.totalorder 1, %s30
    %p569 = scmp.lt.s32.totalorder %s30, 3
    %p570 = pnand %p568, %p569
    %p571 = pneg %p570
    // Predicated region
    $region9: #{bilat_tcn_forward.1} parent=5 // pred_check
      _
    $region10: #{bilat_tcn_forward.1} parent=5 // pred_check_branch
      %573 = sbr.rel (%p570) target = $region12
    $region11: #{bilat_tcn_forward.1} parent=5 // pred_region
      %s574 = ssub.s32 %s30, 1
      // Predicated region
      $region13: #{bilat_tcn_forward.1} parent=11 // pred_check
        %p575 = pneg %p51
      $region14: #{bilat_tcn_forward.1} parent=11 // pred_check_branch
        %577 = sbr.rel (%p575) target = $region16
      $region15: #{bilat_tcn_forward.1} parent=11 // pred_region
        _
      $region16: #{bilat_tcn_forward.1} parent=11 // pred_fallthru
        _
      // Predicated region
      $region17: #{bilat_tcn_forward.1} parent=11 // pred_check
        %p578 = pneg %p72
      $region18: #{bilat_tcn_forward.1} parent=11 // pred_check_branch
        %580 = sbr.rel (%p578) target = $region20
      $region19: #{bilat_tcn_forward.1} parent=11 // pred_region
        _
      $region20: #{bilat_tcn_forward.1} parent=11 // pred_fallthru
        _
      // Predicated region
      $region21: #{bilat_tcn_forward.1} parent=11 // pred_check
        %p581 = pneg %p93
      $region22: #{bilat_tcn_forward.1} parent=11 // pred_check_branch
        %583 = sbr.rel (%p581) target = $region24
      $region23: #{bilat_tcn_forward.1} parent=11 // pred_region
        _
      $region24: #{bilat_tcn_forward.1} parent=11 // pred_fallthru
        _
      // Predicated region
      $region25: #{bilat_tcn_forward.1} parent=11 // pred_check
        %p584 = pneg %p114
      $region26: #{bilat_tcn_forward.1} parent=11 // pred_check_branch
        %586 = sbr.rel (%p584) target = $region28
      $region27: #{bilat_tcn_forward.1} parent=11 // pred_region
        _
      $region28: #{bilat_tcn_forward.1} parent=11 // pred_fallthru
        _
      // Predicated region
      $region29: #{bilat_tcn_forward.1} parent=11 // pred_check
        %p587 = pneg %p135
      $region30: #{bilat_tcn_forward.1} parent=11 // pred_check_branch
        %589 = sbr.rel (%p587) target = $region32
      $region31: #{bilat_tcn_forward.1} parent=11 // pred_region
        _
      $region32: #{bilat_tcn_forward.1} parent=11 // pred_fallthru
        _
      // Predicated region
      $region33: #{bilat_tcn_forward.1} parent=11 // pred_check
        %p590 = pneg %p156
      $region34: #{bilat_tcn_forward.1} parent=11 // pred_check_branch
        %592 = sbr.rel (%p590) target = $region36
      $region35: #{bilat_tcn_forward.1} parent=11 // pred_region
        _
      $region36: #{bilat_tcn_forward.1} parent=11 // pred_fallthru
        _
      // Predicated region
      $region37: #{bilat_tcn_forward.1} parent=11 // pred_check
        %p593 = pneg %p177
      $region38: #{bilat_tcn_forward.1} parent=11 // pred_check_branch
        %595 = sbr.rel (%p593) target = $region40
      $region39: #{bilat_tcn_forward.1} parent=11 // pred_region
        _
      $region40: #{bilat_tcn_forward.1} parent=11 // pred_fallthru
        _
      // Predicated region
      $region41: #{bilat_tcn_forward.1} parent=11 // pred_check
        %p596 = pneg %p198
      $region42: #{bilat_tcn_forward.1} parent=11 // pred_check_branch
        %598 = sbr.rel (%p596) target = $region44
      $region43: #{bilat_tcn_forward.1} parent=11 // pred_region
        _
      $region44: #{bilat_tcn_forward.1} parent=11 // pred_fallthru
        _
      // Predicated region
      $region45: #{bilat_tcn_forward.1} parent=11 // pred_check
        %p599 = pneg %p219
      $region46: #{bilat_tcn_forward.1} parent=11 // pred_check_branch
        %601 = sbr.rel (%p599) target = $region48
      $region47: #{bilat_tcn_forward.1} parent=11 // pred_region
        _
      $region48: #{bilat_tcn_forward.1} parent=11 // pred_fallthru
        _
      // Predicated region
      $region49: #{bilat_tcn_forward.1} parent=11 // pred_check
        %p602 = pneg %p240
      $region50: #{bilat_tcn_forward.1} parent=11 // pred_check_branch
        %604 = sbr.rel (%p602) target = $region52
      $region51: #{bilat_tcn_forward.1} parent=11 // pred_region
        _
      $region52: #{bilat_tcn_forward.1} parent=11 // pred_fallthru
        _
      // Predicated region
      $region53: #{bilat_tcn_forward.1} parent=11 // pred_check
        %p605 = pneg %p261
      $region54: #{bilat_tcn_forward.1} parent=11 // pred_check_branch
        %607 = sbr.rel (%p605) target = $region56
      $region55: #{bilat_tcn_forward.1} parent=11 // pred_region
        _
      $region56: #{bilat_tcn_forward.1} parent=11 // pred_fallthru
        _
      // Predicated region
      $region57: #{bilat_tcn_forward.1} parent=11 // pred_check
        %p608 = pneg %p282
      $region58: #{bilat_tcn_forward.1} parent=11 // pred_check_branch
        %610 = sbr.rel (%p608) target = $region60
      $region59: #{bilat_tcn_forward.1} parent=11 // pred_region
        _
      $region60: #{bilat_tcn_forward.1} parent=11 // pred_fallthru
        _
      // Predicated region
      $region61: #{bilat_tcn_forward.1} parent=11 // pred_check
        %p611 = pneg %p303
      $region62: #{bilat_tcn_forward.1} parent=11 // pred_check_branch
        %613 = sbr.rel (%p611) target = $region64
      $region63: #{bilat_tcn_forward.1} parent=11 // pred_region
        _
      $region64: #{bilat_tcn_forward.1} parent=11 // pred_fallthru
        _
      // Predicated region
      $region65: #{bilat_tcn_forward.1} parent=11 // pred_check
        %p614 = pneg %p324
      $region66: #{bilat_tcn_forward.1} parent=11 // pred_check_branch
        %616 = sbr.rel (%p614) target = $region68
      $region67: #{bilat_tcn_forward.1} parent=11 // pred_region
        _
      $region68: #{bilat_tcn_forward.1} parent=11 // pred_fallthru
        _
      // Predicated region
      $region69: #{bilat_tcn_forward.1} parent=11 // pred_check
        %p617 = pneg %p345
      $region70: #{bilat_tcn_forward.1} parent=11 // pred_check_branch
        %619 = sbr.rel (%p617) target = $region72
      $region71: #{bilat_tcn_forward.1} parent=11 // pred_region
        _
      $region72: #{bilat_tcn_forward.1} parent=11 // pred_fallthru
        _
      // Predicated region
      $region73: #{bilat_tcn_forward.1} parent=11 // pred_check
        %p620 = pneg %p366
      $region74: #{bilat_tcn_forward.1} parent=11 // pred_check_branch
        %622 = sbr.rel (%p620) target = $region76
      $region75: #{bilat_tcn_forward.1} parent=11 // pred_region
        _
      $region76: #{bilat_tcn_forward.1} parent=11 // pred_fallthru
        _
      // Predicated region
      $region77: #{bilat_tcn_forward.1} parent=11 // pred_check
        %p623 = pneg %p387
      $region78: #{bilat_tcn_forward.1} parent=11 // pred_check_branch
        %625 = sbr.rel (%p623) target = $region80
      $region79: #{bilat_tcn_forward.1} parent=11 // pred_region
        _
      $region80: #{bilat_tcn_forward.1} parent=11 // pred_fallthru
        _
      // Predicated region
      $region81: #{bilat_tcn_forward.1} parent=11 // pred_check
        %p626 = pneg %p408
      $region82: #{bilat_tcn_forward.1} parent=11 // pred_check_branch
        %628 = sbr.rel (%p626) target = $region84
      $region83: #{bilat_tcn_forward.1} parent=11 // pred_region
        _
      $region84: #{bilat_tcn_forward.1} parent=11 // pred_fallthru
        _
      // Predicated region
      $region85: #{bilat_tcn_forward.1} parent=11 // pred_check
        %p629 = pneg %p429
      $region86: #{bilat_tcn_forward.1} parent=11 // pred_check_branch
        %631 = sbr.rel (%p629) target = $region88
      $region87: #{bilat_tcn_forward.1} parent=11 // pred_region
        _
      $region88: #{bilat_tcn_forward.1} parent=11 // pred_fallthru
        _
      // Predicated region
      $region89: #{bilat_tcn_forward.1} parent=11 // pred_check
        %p632 = pneg %p450
      $region90: #{bilat_tcn_forward.1} parent=11 // pred_check_branch
        %634 = sbr.rel (%p632) target = $region92
      $region91: #{bilat_tcn_forward.1} parent=11 // pred_region
        _
      $region92: #{bilat_tcn_forward.1} parent=11 // pred_fallthru
        _
      // Predicated region
      $region93: #{bilat_tcn_forward.1} parent=11 // pred_check
        %p635 = pneg %p471
      $region94: #{bilat_tcn_forward.1} parent=11 // pred_check_branch
        %637 = sbr.rel (%p635) target = $region96
      $region95: #{bilat_tcn_forward.1} parent=11 // pred_region
        _
      $region96: #{bilat_tcn_forward.1} parent=11 // pred_fallthru
        _
      // Predicated region
      $region97: #{bilat_tcn_forward.1} parent=11 // pred_check
        %p638 = pneg %p492
      $region98: #{bilat_tcn_forward.1} parent=11 // pred_check_branch
        %640 = sbr.rel (%p638) target = $region100
      $region99: #{bilat_tcn_forward.1} parent=11 // pred_region
        _
      $region100: #{bilat_tcn_forward.1} parent=11 // pred_fallthru
        _
      // Predicated region
      $region101: #{bilat_tcn_forward.1} parent=11 // pred_check
        %p641 = pneg %p513
      $region102: #{bilat_tcn_forward.1} parent=11 // pred_check_branch
        %643 = sbr.rel (%p641) target = $region104
      $region103: #{bilat_tcn_forward.1} parent=11 // pred_region
        _
      $region104: #{bilat_tcn_forward.1} parent=11 // pred_fallthru
        _
      // Predicated region
      $region105: #{bilat_tcn_forward.1} parent=11 // pred_check
        %p644 = pneg %p534
      $region106: #{bilat_tcn_forward.1} parent=11 // pred_check_branch
        %646 = sbr.rel (%p644) target = $region108
      $region107: #{bilat_tcn_forward.1} parent=11 // pred_region
        _
      $region108: #{bilat_tcn_forward.1} parent=11 // pred_fallthru
        _
    $region12: #{bilat_tcn_forward.1} parent=5 // pred_fallthru
      _
    %p647 = scmp.lt.s32.totalorder %s30, 2
    // Predicated region
    $region109: #{bilat_tcn_forward.1} parent=5 // pred_check
      %p648 = pneg %p647
    $region110: #{bilat_tcn_forward.1} parent=5 // pred_check_branch
      %650 = sbr.rel (%p648) target = $region112
    $region111: #{bilat_tcn_forward.1} parent=5 // pred_region
      _
    $region112: #{bilat_tcn_forward.1} parent=5 // pred_fallthru
      _
    %p651 = scmp.le.s32.totalorder 1, %s30
    %p652 = scmp.lt.s32.totalorder %s30, 3
    %p653 = pnand %p651, %p652
    %p654 = pneg %p653
    // Predicated region
    $region113: #{bilat_tcn_forward.1} parent=5 // pred_check
      _
    $region114: #{bilat_tcn_forward.1} parent=5 // pred_check_branch
      %656 = sbr.rel (%p653) target = $region116
    $region115: #{bilat_tcn_forward.1} parent=5 // pred_region
      %s657 = ssub.s32 %s30, 1
      %p658 = pneg %p51
      %p659 = pneg %p48
      %p660 = pneg %p72
      %p661 = pneg %p69
      %p662 = pneg %p93
      %p663 = pneg %p90
      %p664 = pneg %p114
      %p665 = pneg %p111
      %p666 = pneg %p135
      %p667 = pneg %p132
      %p668 = pneg %p156
      %p669 = pneg %p153
      %p670 = pneg %p177
      %p671 = pneg %p174
      %p672 = pneg %p198
      %p673 = pneg %p195
      %p674 = pneg %p219
      %p675 = pneg %p216
      %p676 = pneg %p240
      %p677 = pneg %p237
      %p678 = pneg %p261
      %p679 = pneg %p258
      %p680 = pneg %p282
      %p681 = pneg %p279
      %p682 = pneg %p303
      %p683 = pneg %p300
      %p684 = pneg %p324
      %p685 = pneg %p321
      %p686 = pneg %p345
      %p687 = pneg %p342
      %p688 = pneg %p366
      %p689 = pneg %p363
      %p690 = pneg %p387
      %p691 = pneg %p384
      %p692 = pneg %p408
      %p693 = pneg %p405
      %p694 = pneg %p429
      %p695 = pneg %p426
      %p696 = pneg %p450
      %p697 = pneg %p447
      %p698 = pneg %p471
      %p699 = pneg %p468
      %p700 = pneg %p492
      %p701 = pneg %p489
      %p702 = pneg %p513
      %p703 = pneg %p510
      %p704 = pneg %p534
      %p705 = pneg %p531
      %p706 = pneg %p560
      %p707 = pneg %p557
      %p708 = scmp.lt.s32.totalorder %s35, 1
      %s709 = scalar_select %p708, %s35, 1
      %s710 = smul.addr %s709, 8
      %s711 = scalar_lea.vmem %s24, %s710
      %p712 = scmp.lt.s32.totalorder %s35, 1
      %s713 = scalar_select %p712, %s35, 1
      %s714 = smul.addr %s713, 8
      %s715 = scalar_lea.vmem %s24, %s714
      %p717 = scmp.eq.s32.totalorder %s35, 0
      // Predicated region
      $region117: #{bilat_tcn_forward.1} parent=115 // pred_check
        %p718 = pneg %p717
      $region118: #{bilat_tcn_forward.1} parent=115 // pred_check_branch
        %720 = sbr.rel (%p718) target = $region120
      $region119: #{bilat_tcn_forward.1} parent=115 // pred_region
        %v721 = vlaneseq
        %v722 = vand.u32 %v721, 127
        %vm723 = vcmp.ge.s32.totalorder %v722, 4
        %vm724 = vcmp.lt.s32.totalorder %v722, 17
        %vm725 = vmand %vm723, %vm724
        %vm726 = vcmp.ge.s32.totalorder %v722, 21
        %vm727 = vcmp.lt.s32.totalorder %v722, 34
        %vm728 = vmand %vm726, %vm727
        %vm729 = vmor %vm725, %vm728
        %v730 = vsel %vm729, 1.0, 0.0
        %v731 = vld [vmem:[%s0] sm:$0xff]
        %v732 = vld [vmem:[%s2] sm:$0xf]
        %v733 = vld [vmem:[%s3] sm:$0xff]
        %v734 = vld [vmem:[%s4] sm:$0xf]
        %v735 = vld [vmem:[%s5] sm:$0xff]
        %v736 = vpack.c.bf16 %v731, %v731
        %738 = vrot.lane.b32.xlu0 %v736, 2
        %v739 = vpop.permute.xlu0 %738
        %vm740 = vcmask 15360
        %v743 = vsel %vm740, 0, %v739
        %v745 = vrot.slane %v743, 4
        %746 = vrot.lane.b32.xlu0 %v745, 127
        %v747 = vpop.permute.xlu0 %746
        %748 = vrot.lane.b32.xlu0 %v743, 126
        %v749 = vpop.permute.xlu0 %748
        %vm750 = vcmask 1043456
        %v752 = vsel %vm750, %v743, %v747
        %755 = vset.pattern.permute.xlu0 0
        %756 = vperm.xlu0 %755, %v733
        %v757 = vpop.permute.xlu0 %756
        %vm759 = vcmask 195584
        %v761 = vsel %vm759, %v732, 0
        %v764 = vsel %vm750, %v749, 0
        %766 = vmatprep.subr.bf16.mxu0 0
        %767 = vmatpush1.bf16.msra.mxu0 0
        %768 = vmatprep.subr.bf16.mxu0 0
        %769 = vmatpush1.bf16.msra.mxu0 0
        %770 = vmatprep.subr.bf16.mxu0 0
        %771 = vmatpush1.bf16.msra.mxu0 0
        %772 = vmatprep.subr.bf16.mxu0 0
        %773 = vmatpush1.bf16.msra.mxu0 0
        %774 = vmatprep.subr.bf16.mxu0 0
        %775 = vmatpush1.bf16.msra.mxu0 0
        %776 = vmatprep.subr.bf16.mxu0 0
        %777 = vmatpush1.bf16.msra.mxu0 0
        %778 = vmatprep.subr.bf16.mxu0 0
        %779 = vmatpush1.bf16.msra.mxu0 %v764
        %780 = vmatprep.subr.bf16.mxu0 0
        %781 = vmatpush1.bf16.msra.mxu0 %v752
        %782 = vmatprep.subr.bf16.mxu0 0
        %783 = vmatpush2.bf16.msra.mxu0 0
        %784 = vmatprep.subr.bf16.mxu0 0
        %785 = vmatpush2.bf16.msra.mxu0 0
        %786 = vmatprep.subr.bf16.mxu0 0
        %787 = vmatpush2.bf16.msra.mxu0 0
        %788 = vmatprep.subr.bf16.mxu0 0
        %789 = vmatpush2.bf16.msra.mxu0 0
        %790 = vmatprep.subr.bf16.mxu0 0
        %791 = vmatpush2.bf16.msra.mxu0 0
        %792 = vmatprep.subr.bf16.mxu0 0
        %793 = vmatpush2.bf16.msra.mxu0 0
        %794 = vmatprep.subr.bf16.mxu0 0
        %795 = vmatpush2.bf16.msra.mxu0 0
        %796 = vmatprep.subr.bf16.mxu0 0
        %797 = vmatpush2.bf16.msra.mxu0 0
        %798 = vmatprep.mubr.bf16.mxu0 0
        %799 = vmatmul.mubr.bf16.gmra.mxu0 %v761
        %v800 = vpop.f32.mrf.mxu0
        %v801 = vadd.f32 %v757, %v800
        %v802 = vpop.f32.mrf.mxu0
        %v803 = vpop.f32.mrf.mxu0
        %v804 = vpop.f32.mrf.mxu0
        %805 = vdwg.mxu0
        %v806 = vmax.f32 %v801, 0.0
        %v807 = vmul.f32 %v806, %v730
        %v808 = vpack.c.bf16 %v807, %v807
        %810 = vrot.lane.b32.xlu0 %v808, 2
        %v811 = vpop.permute.xlu0 %810
        %v813 = vsel %vm740, 0, %v811
        %v815 = vrot.slane %v813, 4
        %816 = vrot.lane.b32.xlu0 %v815, 127
        %v817 = vpop.permute.xlu0 %816
        %818 = vrot.lane.b32.xlu0 %v813, 126
        %v819 = vpop.permute.xlu0 %818
        %v821 = vsel %vm750, %v813, %v817
        %824 = vset.pattern.permute.xlu0 0
        %825 = vperm.xlu0 %824, %v735
        %v826 = vpop.permute.xlu0 %825
        %v829 = vsel %vm759, %v734, 0
        %v832 = vsel %vm750, %v819, 0
        %834 = vmatprep.subr.bf16.mxu0 0
        %835 = vmatpush1.bf16.msra.mxu0 0
        %836 = vmatprep.subr.bf16.mxu0 0
        %837 = vmatpush1.bf16.msra.mxu0 0
        %838 = vmatprep.subr.bf16.mxu0 0
        %839 = vmatpush1.bf16.msra.mxu0 0
        %840 = vmatprep.subr.bf16.mxu0 0
        %841 = vmatpush1.bf16.msra.mxu0 0
        %842 = vmatprep.subr.bf16.mxu0 0
        %843 = vmatpush1.bf16.msra.mxu0 0
        %844 = vmatprep.subr.bf16.mxu0 0
        %845 = vmatpush1.bf16.msra.mxu0 0
        %846 = vmatprep.subr.bf16.mxu0 0
        %847 = vmatpush1.bf16.msra.mxu0 %v832
        %848 = vmatprep.subr.bf16.mxu0 0
        %849 = vmatpush1.bf16.msra.mxu0 %v821
        %850 = vmatprep.subr.bf16.mxu0 0
        %851 = vmatpush2.bf16.msra.mxu0 0
        %852 = vmatprep.subr.bf16.mxu0 0
        %853 = vmatpush2.bf16.msra.mxu0 0
        %854 = vmatprep.subr.bf16.mxu0 0
        %855 = vmatpush2.bf16.msra.mxu0 0
        %856 = vmatprep.subr.bf16.mxu0 0
        %857 = vmatpush2.bf16.msra.mxu0 0
        %858 = vmatprep.subr.bf16.mxu0 0
        %859 = vmatpush2.bf16.msra.mxu0 0
        %860 = vmatprep.subr.bf16.mxu0 0
        %861 = vmatpush2.bf16.msra.mxu0 0
        %862 = vmatprep.subr.bf16.mxu0 0
        %863 = vmatpush2.bf16.msra.mxu0 0
        %864 = vmatprep.subr.bf16.mxu0 0
        %865 = vmatpush2.bf16.msra.mxu0 0
        %866 = vmatprep.mubr.bf16.mxu0 0
        %867 = vmatmul.mubr.bf16.gmra.mxu0 %v829
        %v868 = vpop.f32.mrf.mxu0
        %v869 = vadd.f32 %v826, %v868
        %v870 = vpop.f32.mrf.mxu0
        %v871 = vpop.f32.mrf.mxu0
        %v872 = vpop.f32.mrf.mxu0
        %873 = vdwg.mxu0
        %v874 = vmax.f32 %v869, 0.0
        %v875 = vld [vmem:[%s6] sm:$0xf]
        %v876 = vld [vmem:[%s7] sm:$0xff]
        %878 = vset.pattern.permute.xlu0 0
        %879 = vperm.xlu0 %878, %v876
        %v880 = vpop.permute.xlu0 %879
        %vm882 = vcmask 64512
        %v884 = vsel %vm882, %v875, 0
        %v887 = vsel %vm750, %v736, 0
        %889 = vmatprep.subr.bf16.mxu0 0
        %890 = vmatpush1.bf16.msra.mxu0 0
        %891 = vmatprep.subr.bf16.mxu0 0
        %892 = vmatpush1.bf16.msra.mxu0 0
        %893 = vmatprep.subr.bf16.mxu0 0
        %894 = vmatpush1.bf16.msra.mxu0 0
        %895 = vmatprep.subr.bf16.mxu0 0
        %896 = vmatpush1.bf16.msra.mxu0 0
        %897 = vmatprep.subr.bf16.mxu0 0
        %898 = vmatpush1.bf16.msra.mxu0 0
        %899 = vmatprep.subr.bf16.mxu0 0
        %900 = vmatpush1.bf16.msra.mxu0 0
        %901 = vmatprep.subr.bf16.mxu0 0
        %902 = vmatpush1.bf16.msra.mxu0 0
        %903 = vmatprep.subr.bf16.mxu0 0
        %904 = vmatpush1.bf16.msra.mxu0 %v887
        %905 = vmatprep.subr.bf16.mxu0 0
        %906 = vmatpush2.bf16.msra.mxu0 0
        %907 = vmatprep.subr.bf16.mxu0 0
        %908 = vmatpush2.bf16.msra.mxu0 0
        %909 = vmatprep.subr.bf16.mxu0 0
        %910 = vmatpush2.bf16.msra.mxu0 0
        %911 = vmatprep.subr.bf16.mxu0 0
        %912 = vmatpush2.bf16.msra.mxu0 0
        %913 = vmatprep.subr.bf16.mxu0 0
        %914 = vmatpush2.bf16.msra.mxu0 0
        %915 = vmatprep.subr.bf16.mxu0 0
        %916 = vmatpush2.bf16.msra.mxu0 0
        %917 = vmatprep.subr.bf16.mxu0 0
        %918 = vmatpush2.bf16.msra.mxu0 0
        %919 = vmatprep.subr.bf16.mxu0 0
        %920 = vmatpush2.bf16.msra.mxu0 0
        %921 = vmatprep.mubr.bf16.mxu0 0
        %922 = vmatmul.mubr.bf16.gmra.mxu0 %v884
        %v923 = vpop.f32.mrf.mxu0
        %v924 = vadd.f32 %v880, %v923
        %v925 = vpop.f32.mrf.mxu0
        %v926 = vpop.f32.mrf.mxu0
        %v927 = vpop.f32.mrf.mxu0
        %928 = vdwg.mxu0
        %v929 = vadd.f32 %v874, %v924
        %v930 = vmax.f32 %v929, 0.0
        %v931 = vmul.f32 %v930, %v730
        %v932 = vld [vmem:[%s8] sm:$0xf]
        %v933 = vld [vmem:[%s9] sm:$0xff]
        %v934 = vld [vmem:[%s10] sm:$0xf]
        %v935 = vld [vmem:[%s11] sm:$0xff]
        %v936 = vpack.c.bf16 %v931, %v931
        %938 = vrot.lane.b32.xlu0 %v936, 4
        %v939 = vpop.permute.xlu0 %938
        %vm940 = vcmask 31744
        %v942 = vsel %vm940, 0, %v939
        %v944 = vrot.slane %v942, 4
        %945 = vrot.lane.b32.xlu0 %v944, 126
        %v946 = vpop.permute.xlu0 %945
        %947 = vrot.lane.b32.xlu0 %v942, 124
        %v948 = vpop.permute.xlu0 %947
        %v950 = vsel %vm750, %v942, %v946
        %953 = vset.pattern.permute.xlu0 0
        %954 = vperm.xlu0 %953, %v933
        %v955 = vpop.permute.xlu0 %954
        %v958 = vsel %vm759, %v932, 0
        %v961 = vsel %vm750, %v948, 0
        %963 = vmatprep.subr.bf16.mxu0 0
        %964 = vmatpush1.bf16.msra.mxu0 0
        %965 = vmatprep.subr.bf16.mxu0 0
        %966 = vmatpush1.bf16.msra.mxu0 0
        %967 = vmatprep.subr.bf16.mxu0 0
        %968 = vmatpush1.bf16.msra.mxu0 0
        %969 = vmatprep.subr.bf16.mxu0 0
        %970 = vmatpush1.bf16.msra.mxu0 0
        %971 = vmatprep.subr.bf16.mxu0 0
        %972 = vmatpush1.bf16.msra.mxu0 0
        %973 = vmatprep.subr.bf16.mxu0 0
        %974 = vmatpush1.bf16.msra.mxu0 0
        %975 = vmatprep.subr.bf16.mxu0 0
        %976 = vmatpush1.bf16.msra.mxu0 %v961
        %977 = vmatprep.subr.bf16.mxu0 0
        %978 = vmatpush1.bf16.msra.mxu0 %v950
        %979 = vmatprep.subr.bf16.mxu0 0
        %980 = vmatpush2.bf16.msra.mxu0 0
        %981 = vmatprep.subr.bf16.mxu0 0
        %982 = vmatpush2.bf16.msra.mxu0 0
        %983 = vmatprep.subr.bf16.mxu0 0
        %984 = vmatpush2.bf16.msra.mxu0 0
        %985 = vmatprep.subr.bf16.mxu0 0
        %986 = vmatpush2.bf16.msra.mxu0 0
        %987 = vmatprep.subr.bf16.mxu0 0
        %988 = vmatpush2.bf16.msra.mxu0 0
        %989 = vmatprep.subr.bf16.mxu0 0
        %990 = vmatpush2.bf16.msra.mxu0 0
        %991 = vmatprep.subr.bf16.mxu0 0
        %992 = vmatpush2.bf16.msra.mxu0 0
        %993 = vmatprep.subr.bf16.mxu0 0
        %994 = vmatpush2.bf16.msra.mxu0 0
        %995 = vmatprep.mubr.bf16.mxu0 0
        %996 = vmatmul.mubr.bf16.gmra.mxu0 %v958
        %v997 = vpop.f32.mrf.mxu0
        %v998 = vadd.f32 %v955, %v997
        %v999 = vpop.f32.mrf.mxu0
        %v1000 = vpop.f32.mrf.mxu0
        %v1001 = vpop.f32.mrf.mxu0
        %1002 = vdwg.mxu0
        %v1003 = vmax.f32 %v998, 0.0
        %v1004 = vmul.f32 %v1003, %v730
        %v1005 = vpack.c.bf16 %v1004, %v1004
        %1007 = vrot.lane.b32.xlu0 %v1005, 4
        %v1008 = vpop.permute.xlu0 %1007
        %v1010 = vsel %vm940, 0, %v1008
        %v1012 = vrot.slane %v1010, 4
        %1013 = vrot.lane.b32.xlu0 %v1012, 126
        %v1014 = vpop.permute.xlu0 %1013
        %1015 = vrot.lane.b32.xlu0 %v1010, 124
        %v1016 = vpop.permute.xlu0 %1015
        %v1018 = vsel %vm750, %v1010, %v1014
        %1021 = vset.pattern.permute.xlu0 0
        %1022 = vperm.xlu0 %1021, %v935
        %v1023 = vpop.permute.xlu0 %1022
        %v1026 = vsel %vm759, %v934, 0
        %v1029 = vsel %vm750, %v1016, 0
        %1031 = vmatprep.subr.bf16.mxu0 0
        %1032 = vmatpush1.bf16.msra.mxu0 0
        %1033 = vmatprep.subr.bf16.mxu0 0
        %1034 = vmatpush1.bf16.msra.mxu0 0
        %1035 = vmatprep.subr.bf16.mxu0 0
        %1036 = vmatpush1.bf16.msra.mxu0 0
        %1037 = vmatprep.subr.bf16.mxu0 0
        %1038 = vmatpush1.bf16.msra.mxu0 0
        %1039 = vmatprep.subr.bf16.mxu0 0
        %1040 = vmatpush1.bf16.msra.mxu0 0
        %1041 = vmatprep.subr.bf16.mxu0 0
        %1042 = vmatpush1.bf16.msra.mxu0 0
        %1043 = vmatprep.subr.bf16.mxu0 0
        %1044 = vmatpush1.bf16.msra.mxu0 %v1029
        %1045 = vmatprep.subr.bf16.mxu0 0
        %1046 = vmatpush1.bf16.msra.mxu0 %v1018
        %1047 = vmatprep.subr.bf16.mxu0 0
        %1048 = vmatpush2.bf16.msra.mxu0 0
        %1049 = vmatprep.subr.bf16.mxu0 0
        %1050 = vmatpush2.bf16.msra.mxu0 0
        %1051 = vmatprep.subr.bf16.mxu0 0
        %1052 = vmatpush2.bf16.msra.mxu0 0
        %1053 = vmatprep.subr.bf16.mxu0 0
        %1054 = vmatpush2.bf16.msra.mxu0 0
        %1055 = vmatprep.subr.bf16.mxu0 0
        %1056 = vmatpush2.bf16.msra.mxu0 0
        %1057 = vmatprep.subr.bf16.mxu0 0
        %1058 = vmatpush2.bf16.msra.mxu0 0
        %1059 = vmatprep.subr.bf16.mxu0 0
        %1060 = vmatpush2.bf16.msra.mxu0 0
        %1061 = vmatprep.subr.bf16.mxu0 0
        %1062 = vmatpush2.bf16.msra.mxu0 0
        %1063 = vmatprep.mubr.bf16.mxu0 0
        %1064 = vmatmul.mubr.bf16.gmra.mxu0 %v1026
        %v1065 = vpop.f32.mrf.mxu0
        %v1066 = vadd.f32 %v1023, %v1065
        %v1067 = vpop.f32.mrf.mxu0
        %v1068 = vpop.f32.mrf.mxu0
        %v1069 = vpop.f32.mrf.mxu0
        %1070 = vdwg.mxu0
        %v1071 = vmax.f32 %v1066, 0.0
        %v1072 = vadd.f32 %v1071, %v931
        %v1073 = vmax.f32 %v1072, 0.0
        %v1074 = vmul.f32 %v1073, %v730
        %1076 = vrot.lane.b32.xlu0 %v1074, 112
        %v1077 = vpop.permute.xlu0 %1076
        %1079 = vrot.lane.b32.xlu0 %v1074, 96
        %v1080 = vpop.permute.xlu0 %1079
        %vm1082 = vcmask 7168
        %v1083 = vsel %vm1082, %v1077, %v1080
        %v1084 = vld [vmem:[%s22] sm:$0xf]
        %v1085 = vpack.c.bf16 %v1083, %v1083
        %v1087 = vsel %vm882, %v1084, 0
        %v1090 = vsel %vm750, %v1085, 0
        %1092 = vmatprep.subr.bf16.mxu0 0
        %1093 = vmatpush1.bf16.msra.mxu0 0
        %1094 = vmatprep.subr.bf16.mxu0 0
        %1095 = vmatpush1.bf16.msra.mxu0 0
        %1096 = vmatprep.subr.bf16.mxu0 0
        %1097 = vmatpush1.bf16.msra.mxu0 0
        %1098 = vmatprep.subr.bf16.mxu0 0
        %1099 = vmatpush1.bf16.msra.mxu0 0
        %1100 = vmatprep.subr.bf16.mxu0 0
        %1101 = vmatpush1.bf16.msra.mxu0 0
        %1102 = vmatprep.subr.bf16.mxu0 0
        %1103 = vmatpush1.bf16.msra.mxu0 0
        %1104 = vmatprep.subr.bf16.mxu0 0
        %1105 = vmatpush1.bf16.msra.mxu0 0
        %1106 = vmatprep.subr.bf16.mxu0 0
        %1107 = vmatpush1.bf16.msra.mxu0 %v1090
        %1108 = vmatprep.subr.bf16.mxu0 0
        %1109 = vmatpush2.bf16.msra.mxu0 0
        %1110 = vmatprep.subr.bf16.mxu0 0
        %1111 = vmatpush2.bf16.msra.mxu0 0
        %1112 = vmatprep.subr.bf16.mxu0 0
        %1113 = vmatpush2.bf16.msra.mxu0 0
        %1114 = vmatprep.subr.bf16.mxu0 0
        %1115 = vmatpush2.bf16.msra.mxu0 0
        %1116 = vmatprep.subr.bf16.mxu0 0
        %1117 = vmatpush2.bf16.msra.mxu0 0
        %1118 = vmatprep.subr.bf16.mxu0 0
        %1119 = vmatpush2.bf16.msra.mxu0 0
        %1120 = vmatprep.subr.bf16.mxu0 0
        %1121 = vmatpush2.bf16.msra.mxu0 0
        %1122 = vmatprep.subr.bf16.mxu0 0
        %1123 = vmatpush2.bf16.msra.mxu0 0
        %1124 = vmatprep.mubr.bf16.mxu0 0
        %1125 = vmatmul.mubr.bf16.gmra.mxu0 %v1087
        %v1126 = vpop.f32.mrf.mxu0
        %v1127 = vadd.f32 0.0, %v1126
        %v1128 = vpop.f32.mrf.mxu0
        %v1129 = vpop.f32.mrf.mxu0
        %v1130 = vpop.f32.mrf.mxu0
        %1131 = vdwg.mxu0
        %1132 = vst.msk [vmem:[%s715] sm:$0xff] %vm740, %v1127
      $region120: #{bilat_tcn_forward.1} parent=115 // pred_fallthru
        _
      %p1133 = scmp.eq.s32.totalorder %s35, 1
      // Predicated region
      $region121: #{bilat_tcn_forward.1} parent=115 // pred_check
        %p1134 = pneg %p1133
      $region122: #{bilat_tcn_forward.1} parent=115 // pred_check_branch
        %1136 = sbr.rel (%p1134) target = $region124
      $region123: #{bilat_tcn_forward.1} parent=115 // pred_region
        %v1137 = vlaneseq
        %v1138 = vand.u32 %v1137, 127
        %vm1139 = vcmp.ge.s32.totalorder %v1138, 4
        %vm1140 = vcmp.lt.s32.totalorder %v1138, 17
        %vm1141 = vmand %vm1139, %vm1140
        %vm1142 = vcmp.ge.s32.totalorder %v1138, 21
        %vm1143 = vcmp.lt.s32.totalorder %v1138, 34
        %vm1144 = vmand %vm1142, %vm1143
        %vm1145 = vmor %vm1141, %vm1144
        %v1146 = vsel %vm1145, 1.0, 0.0
        %v1147 = vld [vmem:[%s1] sm:$0xff]
        %v1148 = vld [vmem:[%s12] sm:$0xf]
        %v1149 = vld [vmem:[%s13] sm:$0xff]
        %v1150 = vld [vmem:[%s14] sm:$0xf]
        %v1151 = vld [vmem:[%s15] sm:$0xff]
        %v1152 = vpack.c.bf16 %v1147, %v1147
        %1154 = vrot.lane.b32.xlu0 %v1152, 2
        %v1155 = vpop.permute.xlu0 %1154
        %vm1156 = vcmask 15360
        %v1159 = vsel %vm1156, 0, %v1155
        %v1161 = vrot.slane %v1159, 4
        %1162 = vrot.lane.b32.xlu0 %v1161, 127
        %v1163 = vpop.permute.xlu0 %1162
        %1164 = vrot.lane.b32.xlu0 %v1159, 126
        %v1165 = vpop.permute.xlu0 %1164
        %vm1166 = vcmask 1043456
        %v1168 = vsel %vm1166, %v1159, %v1163
        %1171 = vset.pattern.permute.xlu0 0
        %1172 = vperm.xlu0 %1171, %v1149
        %v1173 = vpop.permute.xlu0 %1172
        %vm1175 = vcmask 195584
        %v1177 = vsel %vm1175, %v1148, 0
        %v1180 = vsel %vm1166, %v1165, 0
        %1182 = vmatprep.subr.bf16.mxu0 0
        %1183 = vmatpush1.bf16.msra.mxu0 0
        %1184 = vmatprep.subr.bf16.mxu0 0
        %1185 = vmatpush1.bf16.msra.mxu0 0
        %1186 = vmatprep.subr.bf16.mxu0 0
        %1187 = vmatpush1.bf16.msra.mxu0 0
        %1188 = vmatprep.subr.bf16.mxu0 0
        %1189 = vmatpush1.bf16.msra.mxu0 0
        %1190 = vmatprep.subr.bf16.mxu0 0
        %1191 = vmatpush1.bf16.msra.mxu0 0
        %1192 = vmatprep.subr.bf16.mxu0 0
        %1193 = vmatpush1.bf16.msra.mxu0 0
        %1194 = vmatprep.subr.bf16.mxu0 0
        %1195 = vmatpush1.bf16.msra.mxu0 %v1180
        %1196 = vmatprep.subr.bf16.mxu0 0
        %1197 = vmatpush1.bf16.msra.mxu0 %v1168
        %1198 = vmatprep.subr.bf16.mxu0 0
        %1199 = vmatpush2.bf16.msra.mxu0 0
        %1200 = vmatprep.subr.bf16.mxu0 0
        %1201 = vmatpush2.bf16.msra.mxu0 0
        %1202 = vmatprep.subr.bf16.mxu0 0
        %1203 = vmatpush2.bf16.msra.mxu0 0
        %1204 = vmatprep.subr.bf16.mxu0 0
        %1205 = vmatpush2.bf16.msra.mxu0 0
        %1206 = vmatprep.subr.bf16.mxu0 0
        %1207 = vmatpush2.bf16.msra.mxu0 0
        %1208 = vmatprep.subr.bf16.mxu0 0
        %1209 = vmatpush2.bf16.msra.mxu0 0
        %1210 = vmatprep.subr.bf16.mxu0 0
        %1211 = vmatpush2.bf16.msra.mxu0 0
        %1212 = vmatprep.subr.bf16.mxu0 0
        %1213 = vmatpush2.bf16.msra.mxu0 0
        %1214 = vmatprep.mubr.bf16.mxu0 0
        %1215 = vmatmul.mubr.bf16.gmra.mxu0 %v1177
        %v1216 = vpop.f32.mrf.mxu0
        %v1217 = vadd.f32 %v1173, %v1216
        %v1218 = vpop.f32.mrf.mxu0
        %v1219 = vpop.f32.mrf.mxu0
        %v1220 = vpop.f32.mrf.mxu0
        %1221 = vdwg.mxu0
        %v1222 = vmax.f32 %v1217, 0.0
        %v1223 = vmul.f32 %v1222, %v1146
        %v1224 = vpack.c.bf16 %v1223, %v1223
        %1226 = vrot.lane.b32.xlu0 %v1224, 2
        %v1227 = vpop.permute.xlu0 %1226
        %v1229 = vsel %vm1156, 0, %v1227
        %v1231 = vrot.slane %v1229, 4
        %1232 = vrot.lane.b32.xlu0 %v1231, 127
        %v1233 = vpop.permute.xlu0 %1232
        %1234 = vrot.lane.b32.xlu0 %v1229, 126
        %v1235 = vpop.permute.xlu0 %1234
        %v1237 = vsel %vm1166, %v1229, %v1233
        %1240 = vset.pattern.permute.xlu0 0
        %1241 = vperm.xlu0 %1240, %v1151
        %v1242 = vpop.permute.xlu0 %1241
        %v1245 = vsel %vm1175, %v1150, 0
        %v1248 = vsel %vm1166, %v1235, 0
        %1250 = vmatprep.subr.bf16.mxu0 0
        %1251 = vmatpush1.bf16.msra.mxu0 0
        %1252 = vmatprep.subr.bf16.mxu0 0
        %1253 = vmatpush1.bf16.msra.mxu0 0
        %1254 = vmatprep.subr.bf16.mxu0 0
        %1255 = vmatpush1.bf16.msra.mxu0 0
        %1256 = vmatprep.subr.bf16.mxu0 0
        %1257 = vmatpush1.bf16.msra.mxu0 0
        %1258 = vmatprep.subr.bf16.mxu0 0
        %1259 = vmatpush1.bf16.msra.mxu0 0
        %1260 = vmatprep.subr.bf16.mxu0 0
        %1261 = vmatpush1.bf16.msra.mxu0 0
        %1262 = vmatprep.subr.bf16.mxu0 0
        %1263 = vmatpush1.bf16.msra.mxu0 %v1248
        %1264 = vmatprep.subr.bf16.mxu0 0
        %1265 = vmatpush1.bf16.msra.mxu0 %v1237
        %1266 = vmatprep.subr.bf16.mxu0 0
        %1267 = vmatpush2.bf16.msra.mxu0 0
        %1268 = vmatprep.subr.bf16.mxu0 0
        %1269 = vmatpush2.bf16.msra.mxu0 0
        %1270 = vmatprep.subr.bf16.mxu0 0
        %1271 = vmatpush2.bf16.msra.mxu0 0
        %1272 = vmatprep.subr.bf16.mxu0 0
        %1273 = vmatpush2.bf16.msra.mxu0 0
        %1274 = vmatprep.subr.bf16.mxu0 0
        %1275 = vmatpush2.bf16.msra.mxu0 0
        %1276 = vmatprep.subr.bf16.mxu0 0
        %1277 = vmatpush2.bf16.msra.mxu0 0
        %1278 = vmatprep.subr.bf16.mxu0 0
        %1279 = vmatpush2.bf16.msra.mxu0 0
        %1280 = vmatprep.subr.bf16.mxu0 0
        %1281 = vmatpush2.bf16.msra.mxu0 0
        %1282 = vmatprep.mubr.bf16.mxu0 0
        %1283 = vmatmul.mubr.bf16.gmra.mxu0 %v1245
        %v1284 = vpop.f32.mrf.mxu0
        %v1285 = vadd.f32 %v1242, %v1284
        %v1286 = vpop.f32.mrf.mxu0
        %v1287 = vpop.f32.mrf.mxu0
        %v1288 = vpop.f32.mrf.mxu0
        %1289 = vdwg.mxu0
        %v1290 = vmax.f32 %v1285, 0.0
        %v1291 = vld [vmem:[%s16] sm:$0xf]
        %v1292 = vld [vmem:[%s17] sm:$0xff]
        %1294 = vset.pattern.permute.xlu0 0
        %1295 = vperm.xlu0 %1294, %v1292
        %v1296 = vpop.permute.xlu0 %1295
        %vm1298 = vcmask 64512
        %v1300 = vsel %vm1298, %v1291, 0
        %v1303 = vsel %vm1166, %v1152, 0
        %1305 = vmatprep.subr.bf16.mxu0 0
        %1306 = vmatpush1.bf16.msra.mxu0 0
        %1307 = vmatprep.subr.bf16.mxu0 0
        %1308 = vmatpush1.bf16.msra.mxu0 0
        %1309 = vmatprep.subr.bf16.mxu0 0
        %1310 = vmatpush1.bf16.msra.mxu0 0
        %1311 = vmatprep.subr.bf16.mxu0 0
        %1312 = vmatpush1.bf16.msra.mxu0 0
        %1313 = vmatprep.subr.bf16.mxu0 0
        %1314 = vmatpush1.bf16.msra.mxu0 0
        %1315 = vmatprep.subr.bf16.mxu0 0
        %1316 = vmatpush1.bf16.msra.mxu0 0
        %1317 = vmatprep.subr.bf16.mxu0 0
        %1318 = vmatpush1.bf16.msra.mxu0 0
        %1319 = vmatprep.subr.bf16.mxu0 0
        %1320 = vmatpush1.bf16.msra.mxu0 %v1303
        %1321 = vmatprep.subr.bf16.mxu0 0
        %1322 = vmatpush2.bf16.msra.mxu0 0
        %1323 = vmatprep.subr.bf16.mxu0 0
        %1324 = vmatpush2.bf16.msra.mxu0 0
        %1325 = vmatprep.subr.bf16.mxu0 0
        %1326 = vmatpush2.bf16.msra.mxu0 0
        %1327 = vmatprep.subr.bf16.mxu0 0
        %1328 = vmatpush2.bf16.msra.mxu0 0
        %1329 = vmatprep.subr.bf16.mxu0 0
        %1330 = vmatpush2.bf16.msra.mxu0 0
        %1331 = vmatprep.subr.bf16.mxu0 0
        %1332 = vmatpush2.bf16.msra.mxu0 0
        %1333 = vmatprep.subr.bf16.mxu0 0
        %1334 = vmatpush2.bf16.msra.mxu0 0
        %1335 = vmatprep.subr.bf16.mxu0 0
        %1336 = vmatpush2.bf16.msra.mxu0 0
        %1337 = vmatprep.mubr.bf16.mxu0 0
        %1338 = vmatmul.mubr.bf16.gmra.mxu0 %v1300
        %v1339 = vpop.f32.mrf.mxu0
        %v1340 = vadd.f32 %v1296, %v1339
        %v1341 = vpop.f32.mrf.mxu0
        %v1342 = vpop.f32.mrf.mxu0
        %v1343 = vpop.f32.mrf.mxu0
        %1344 = vdwg.mxu0
        %v1345 = vadd.f32 %v1290, %v1340
        %v1346 = vmax.f32 %v1345, 0.0
        %v1347 = vmul.f32 %v1346, %v1146
        %v1348 = vld [vmem:[%s18] sm:$0xf]
        %v1349 = vld [vmem:[%s19] sm:$0xff]
        %v1350 = vld [vmem:[%s20] sm:$0xf]
        %v1351 = vld [vmem:[%s21] sm:$0xff]
        %v1352 = vpack.c.bf16 %v1347, %v1347
        %1354 = vrot.lane.b32.xlu0 %v1352, 4
        %v1355 = vpop.permute.xlu0 %1354
        %vm1356 = vcmask 31744
        %v1358 = vsel %vm1356, 0, %v1355
        %v1360 = vrot.slane %v1358, 4
        %1361 = vrot.lane.b32.xlu0 %v1360, 126
        %v1362 = vpop.permute.xlu0 %1361
        %1363 = vrot.lane.b32.xlu0 %v1358, 124
        %v1364 = vpop.permute.xlu0 %1363
        %v1366 = vsel %vm1166, %v1358, %v1362
        %1369 = vset.pattern.permute.xlu0 0
        %1370 = vperm.xlu0 %1369, %v1349
        %v1371 = vpop.permute.xlu0 %1370
        %v1374 = vsel %vm1175, %v1348, 0
        %v1377 = vsel %vm1166, %v1364, 0
        %1379 = vmatprep.subr.bf16.mxu0 0
        %1380 = vmatpush1.bf16.msra.mxu0 0
        %1381 = vmatprep.subr.bf16.mxu0 0
        %1382 = vmatpush1.bf16.msra.mxu0 0
        %1383 = vmatprep.subr.bf16.mxu0 0
        %1384 = vmatpush1.bf16.msra.mxu0 0
        %1385 = vmatprep.subr.bf16.mxu0 0
        %1386 = vmatpush1.bf16.msra.mxu0 0
        %1387 = vmatprep.subr.bf16.mxu0 0
        %1388 = vmatpush1.bf16.msra.mxu0 0
        %1389 = vmatprep.subr.bf16.mxu0 0
        %1390 = vmatpush1.bf16.msra.mxu0 0
        %1391 = vmatprep.subr.bf16.mxu0 0
        %1392 = vmatpush1.bf16.msra.mxu0 %v1377
        %1393 = vmatprep.subr.bf16.mxu0 0
        %1394 = vmatpush1.bf16.msra.mxu0 %v1366
        %1395 = vmatprep.subr.bf16.mxu0 0
        %1396 = vmatpush2.bf16.msra.mxu0 0
        %1397 = vmatprep.subr.bf16.mxu0 0
        %1398 = vmatpush2.bf16.msra.mxu0 0
        %1399 = vmatprep.subr.bf16.mxu0 0
        %1400 = vmatpush2.bf16.msra.mxu0 0
        %1401 = vmatprep.subr.bf16.mxu0 0
        %1402 = vmatpush2.bf16.msra.mxu0 0
        %1403 = vmatprep.subr.bf16.mxu0 0
        %1404 = vmatpush2.bf16.msra.mxu0 0
        %1405 = vmatprep.subr.bf16.mxu0 0
        %1406 = vmatpush2.bf16.msra.mxu0 0
        %1407 = vmatprep.subr.bf16.mxu0 0
        %1408 = vmatpush2.bf16.msra.mxu0 0
        %1409 = vmatprep.subr.bf16.mxu0 0
        %1410 = vmatpush2.bf16.msra.mxu0 0
        %1411 = vmatprep.mubr.bf16.mxu0 0
        %1412 = vmatmul.mubr.bf16.gmra.mxu0 %v1374
        %v1413 = vpop.f32.mrf.mxu0
        %v1414 = vadd.f32 %v1371, %v1413
        %v1415 = vpop.f32.mrf.mxu0
        %v1416 = vpop.f32.mrf.mxu0
        %v1417 = vpop.f32.mrf.mxu0
        %1418 = vdwg.mxu0
        %v1419 = vmax.f32 %v1414, 0.0
        %v1420 = vmul.f32 %v1419, %v1146
        %v1421 = vpack.c.bf16 %v1420, %v1420
        %1423 = vrot.lane.b32.xlu0 %v1421, 4
        %v1424 = vpop.permute.xlu0 %1423
        %v1426 = vsel %vm1356, 0, %v1424
        %v1428 = vrot.slane %v1426, 4
        %1429 = vrot.lane.b32.xlu0 %v1428, 126
        %v1430 = vpop.permute.xlu0 %1429
        %1431 = vrot.lane.b32.xlu0 %v1426, 124
        %v1432 = vpop.permute.xlu0 %1431
        %v1434 = vsel %vm1166, %v1426, %v1430
        %1437 = vset.pattern.permute.xlu0 0
        %1438 = vperm.xlu0 %1437, %v1351
        %v1439 = vpop.permute.xlu0 %1438
        %v1442 = vsel %vm1175, %v1350, 0
        %v1445 = vsel %vm1166, %v1432, 0
        %1447 = vmatprep.subr.bf16.mxu0 0
        %1448 = vmatpush1.bf16.msra.mxu0 0
        %1449 = vmatprep.subr.bf16.mxu0 0
        %1450 = vmatpush1.bf16.msra.mxu0 0
        %1451 = vmatprep.subr.bf16.mxu0 0
        %1452 = vmatpush1.bf16.msra.mxu0 0
        %1453 = vmatprep.subr.bf16.mxu0 0
        %1454 = vmatpush1.bf16.msra.mxu0 0
        %1455 = vmatprep.subr.bf16.mxu0 0
        %1456 = vmatpush1.bf16.msra.mxu0 0
        %1457 = vmatprep.subr.bf16.mxu0 0
        %1458 = vmatpush1.bf16.msra.mxu0 0
        %1459 = vmatprep.subr.bf16.mxu0 0
        %1460 = vmatpush1.bf16.msra.mxu0 %v1445
        %1461 = vmatprep.subr.bf16.mxu0 0
        %1462 = vmatpush1.bf16.msra.mxu0 %v1434
        %1463 = vmatprep.subr.bf16.mxu0 0
        %1464 = vmatpush2.bf16.msra.mxu0 0
        %1465 = vmatprep.subr.bf16.mxu0 0
        %1466 = vmatpush2.bf16.msra.mxu0 0
        %1467 = vmatprep.subr.bf16.mxu0 0
        %1468 = vmatpush2.bf16.msra.mxu0 0
        %1469 = vmatprep.subr.bf16.mxu0 0
        %1470 = vmatpush2.bf16.msra.mxu0 0
        %1471 = vmatprep.subr.bf16.mxu0 0
        %1472 = vmatpush2.bf16.msra.mxu0 0
        %1473 = vmatprep.subr.bf16.mxu0 0
        %1474 = vmatpush2.bf16.msra.mxu0 0
        %1475 = vmatprep.subr.bf16.mxu0 0
        %1476 = vmatpush2.bf16.msra.mxu0 0
        %1477 = vmatprep.subr.bf16.mxu0 0
        %1478 = vmatpush2.bf16.msra.mxu0 0
        %1479 = vmatprep.mubr.bf16.mxu0 0
        %1480 = vmatmul.mubr.bf16.gmra.mxu0 %v1442
        %v1481 = vpop.f32.mrf.mxu0
        %v1482 = vadd.f32 %v1439, %v1481
        %v1483 = vpop.f32.mrf.mxu0
        %v1484 = vpop.f32.mrf.mxu0
        %v1485 = vpop.f32.mrf.mxu0
        %1486 = vdwg.mxu0
        %v1487 = vmax.f32 %v1482, 0.0
        %v1488 = vadd.f32 %v1487, %v1347
        %v1489 = vmax.f32 %v1488, 0.0
        %v1490 = vmul.f32 %v1489, %v1146
        %1492 = vrot.lane.b32.xlu0 %v1490, 112
        %v1493 = vpop.permute.xlu0 %1492
        %1495 = vrot.lane.b32.xlu0 %v1490, 96
        %v1496 = vpop.permute.xlu0 %1495
        %vm1498 = vcmask 7168
        %v1499 = vsel %vm1498, %v1493, %v1496
        %v1500 = vld [vmem:[%s23] sm:$0xf]
        %v1501 = vpack.c.bf16 %v1499, %v1499
        %v1503 = vsel %vm1298, %v1500, 0
        %v1506 = vsel %vm1166, %v1501, 0
        %1508 = vmatprep.subr.bf16.mxu0 0
        %1509 = vmatpush1.bf16.msra.mxu0 0
        %1510 = vmatprep.subr.bf16.mxu0 0
        %1511 = vmatpush1.bf16.msra.mxu0 0
        %1512 = vmatprep.subr.bf16.mxu0 0
        %1513 = vmatpush1.bf16.msra.mxu0 0
        %1514 = vmatprep.subr.bf16.mxu0 0
        %1515 = vmatpush1.bf16.msra.mxu0 0
        %1516 = vmatprep.subr.bf16.mxu0 0
        %1517 = vmatpush1.bf16.msra.mxu0 0
        %1518 = vmatprep.subr.bf16.mxu0 0
        %1519 = vmatpush1.bf16.msra.mxu0 0
        %1520 = vmatprep.subr.bf16.mxu0 0
        %1521 = vmatpush1.bf16.msra.mxu0 0
        %1522 = vmatprep.subr.bf16.mxu0 0
        %1523 = vmatpush1.bf16.msra.mxu0 %v1506
        %1524 = vmatprep.subr.bf16.mxu0 0
        %1525 = vmatpush2.bf16.msra.mxu0 0
        %1526 = vmatprep.subr.bf16.mxu0 0
        %1527 = vmatpush2.bf16.msra.mxu0 0
        %1528 = vmatprep.subr.bf16.mxu0 0
        %1529 = vmatpush2.bf16.msra.mxu0 0
        %1530 = vmatprep.subr.bf16.mxu0 0
        %1531 = vmatpush2.bf16.msra.mxu0 0
        %1532 = vmatprep.subr.bf16.mxu0 0
        %1533 = vmatpush2.bf16.msra.mxu0 0
        %1534 = vmatprep.subr.bf16.mxu0 0
        %1535 = vmatpush2.bf16.msra.mxu0 0
        %1536 = vmatprep.subr.bf16.mxu0 0
        %1537 = vmatpush2.bf16.msra.mxu0 0
        %1538 = vmatprep.subr.bf16.mxu0 0
        %1539 = vmatpush2.bf16.msra.mxu0 0
        %1540 = vmatprep.mubr.bf16.mxu0 0
        %1541 = vmatmul.mubr.bf16.gmra.mxu0 %v1503
        %v1542 = vpop.f32.mrf.mxu0
        %v1543 = vadd.f32 0.0, %v1542
        %v1544 = vpop.f32.mrf.mxu0
        %v1545 = vpop.f32.mrf.mxu0
        %v1546 = vpop.f32.mrf.mxu0
        %1547 = vdwg.mxu0
        %1548 = vst.msk [vmem:[%s715] sm:$0xff] %vm1156, %v1543
      $region124: #{bilat_tcn_forward.1} parent=115 // pred_fallthru
        _
      %p1549 = scmp.lt.s32.totalorder %s35, 1
      %s1550 = scalar_select %p1549, %s35, 1
      %s1551 = smul.addr %s1550, 8
      %s1552 = scalar_lea.vmem %s24, %s1551
      // Predicated region
      $region125: #{bilat_tcn_forward.1} parent=115 // pred_check
        %p1553 = pneg %p557
      $region126: #{bilat_tcn_forward.1} parent=115 // pred_check_branch
        %1555 = sbr.rel (%p1553) target = $region128
      $region127: #{bilat_tcn_forward.1} parent=115 // pred_region
        _
      $region128: #{bilat_tcn_forward.1} parent=115 // pred_fallthru
        _
    $region116: #{bilat_tcn_forward.1} parent=5 // pred_fallthru
      _
    %p1556 = scmp.le.s32.totalorder 2, %s30
    // Predicated region
    $region129: #{bilat_tcn_forward.1} parent=5 // pred_check
      %p1557 = pneg %p1556
    $region130: #{bilat_tcn_forward.1} parent=5 // pred_check_branch
      %1559 = sbr.rel (%p1557) target = $region132
    $region131: #{bilat_tcn_forward.1} parent=5 // pred_region
      %s1560 = ssub.s32 %s30, 2
      // Predicated region
      $region133: #{bilat_tcn_forward.1} parent=131 // pred_check
        %p1561 = pneg %p563
      $region134: #{bilat_tcn_forward.1} parent=131 // pred_check_branch
        %1563 = sbr.rel (%p1561) target = $region136
      $region135: #{bilat_tcn_forward.1} parent=131 // pred_region
        %p1564 = scmp.lt.s32.totalorder %s36, 1
        %s1565 = scalar_select %p1564, %s36, 1
        %s1566 = smul.addr %s1565, 8
        %s1567 = scalar_lea.vmem %s24, %s1566
      $region136: #{bilat_tcn_forward.1} parent=131 // pred_fallthru
        _
    $region132: #{bilat_tcn_forward.1} parent=5 // pred_fallthru
      _
  $region6: #{bilat_tcn_forward.1} parent=0 // loop_footer
    %s34 = sadd.s32 1, %s30
  $region7: #{bilat_tcn_forward.1} parent=0 // loop_footer_branch
    %29 = sbr.rel target = $region3
  $region8: #{bilat_tcn_forward.1} parent=0 // loop_exit
    _

</llo_original>
